<compile_context>
chip_gen: v6e
topology: v6e:2x2x1
jax: 0.10.0
libtpu: 0.0.40
codegen_flags: <defaults>
</compile_context>

<pallas_src>
import functools
import math

import jax
import jax.numpy as jnp
from jax.experimental import pallas as pl
from jax.experimental.pallas import tpu as pltpu


def lstm_fc_kernel(num_layers, hidden_size, batch_pad, seq_len, x_ref, *refs):
    """refs = [w_ih_T_0, w_hh_T_0, b_0, ..., w_ih_T_{L-1}, w_hh_T_{L-1}, b_{L-1},
               fc_w_T, fc_b, out_ref]

    w_ih_T_l : (D_l, 4H) bf16  gate columns ordered [i, f, o, g]; i/f/o cols * 0.5
    w_hh_T_l : (H,   4H) bf16  same ordering / scaling
    b_l      : (1,   4H) f32   (b_ih + b_hh, reordered, i/f/o * 0.5)
    fc_w_T   : (H, O_pad) bf16 lane-padded to a multiple of 128
    fc_b     : (1, O_pad) f32
    out_ref  : (B_pad, O_pad) f32
    """
    *layer_refs, fc_w_ref, fc_b_ref, out_ref = refs
    H, Bp, T, L = hidden_size, batch_pad, seq_len, num_layers

    # Weights / biases loaded once, hoisted out of the recurrence.
    w_ih = [layer_refs[3 * l][...] for l in range(L)]
    w_hh = [layer_refs[3 * l + 1][...] for l in range(L)]
    bias = [layer_refs[3 * l + 2][...] for l in range(L)]

    # Layer 0: batched input projection over ALL timesteps, bias folded in.
    x_proj0 = (
        jnp.dot(x_ref[...], w_ih[0], preferred_element_type=jnp.float32) + bias[0]
    )  # (T*Bp, 4H) f32, time-major

    h = [jnp.zeros((Bp, H), jnp.float32) for _ in range(L)]
    c = [jnp.zeros((Bp, H), jnp.float32) for _ in range(L)]

    def cell(pre_gates, h_l, c_l, w_hh_l):
        # Only serial matmul on the recurrent path: h @ w_hh (constant RHS).
        gates = pre_gates + jnp.dot(
            h_l.astype(jnp.bfloat16), w_hh_l, preferred_element_type=jnp.float32
        )  # (Bp, 4H) f32, column order [i, f, o, g]; i/f/o pre-scaled by 0.5
        t_all = jnp.tanh(gates)               # single EUP pass over the full vreg
        sig = 0.5 * t_all[:, : 3 * H] + 0.5   # = sigmoid of the unscaled i/f/o gates
        i_g = sig[:, 0:H]
        f_g = sig[:, H:2 * H]
        o_g = sig[:, 2 * H:3 * H]
        g_g = t_all[:, 3 * H:]
        c_new = f_g * c_l + i_g * g_g
        h_new = o_g * jnp.tanh(c_new)
        return h_new, c_new

    for t in range(T):
        # Layer 0 consumes its batched projection: aligned (8, 4H) tile view.
        h[0], c[0] = cell(x_proj0[t * Bp:(t + 1) * Bp, :], h[0], c[0], w_hh[0])
        # Layers > 0: per-step input contribution from the layer below
        # (breaks the whole-sequence dependency -> wavefront ILP across layers).
        for l in range(1, L):
            pre = (
                jnp.dot(h[l - 1].astype(jnp.bfloat16), w_ih[l],
                        preferred_element_type=jnp.float32)
                + bias[l]
            )
            h[l], c[l] = cell(pre, h[l], c[l], w_hh[l])

    # h[-1] == output of last layer at last timestep == out[:, -1, :]
    out_ref[...] = (
        jnp.dot(h[L - 1].astype(jnp.bfloat16), fc_w_ref[...],
                preferred_element_type=jnp.float32)
        + fc_b_ref[...]
    )


def lstm_model_forward(x, lstm_params, fc_w, fc_b, hidden_size, output_size):
    """x: (B, T, D_in) float32. lstm_params: list of (w_ih, w_hh, b_ih, b_hh)
    with PyTorch shapes (4H, D_l), (4H, H), (4H,), (4H,); gate order [i,f,g,o]."""
    B, T, D_in = x.shape
    H = hidden_size
    num_layers = len(lstm_params)
    Bp = ((B + 7) // 8) * 8                      # sublane-aligned batch
    O_pad = ((output_size + 127) // 128) * 128   # lane-dense output slab

    def reorder_scale(w):
        # PyTorch gate-block order [i, f, g, o] -> [i, f, o, g] along axis 0,
        # with the i/f/o blocks scaled by 0.5 (folds the sigmoid identity
        # sigmoid(z) = 0.5*tanh(0.5 z) + 0.5 into the weights/bias).
        w = jnp.asarray(w, jnp.float32)
        return jnp.concatenate(
            [0.5 * w[:H], 0.5 * w[H:2 * H], 0.5 * w[3 * H:4 * H], w[2 * H:3 * H]],
            axis=0)

    # Pad batch to Bp (zero rows, discarded at the end) and flatten time-major:
    # row t*Bp + b  <->  (timestep t, batch b).
    x_pad = jnp.zeros((Bp, T, D_in), jnp.float32).at[:B].set(
        jnp.asarray(x, jnp.float32))
    x_flat = jnp.transpose(x_pad, (1, 0, 2)).reshape(T * Bp, D_in)

    inputs = [x_flat.astype(jnp.bfloat16)]
    for (w_ih, w_hh, b_ih, b_hh) in lstm_params:
        w_ih_t = reorder_scale(w_ih).T.astype(jnp.bfloat16)   # (D_l, 4H)
        w_hh_t = reorder_scale(w_hh).T.astype(jnp.bfloat16)   # (H,   4H)
        bias = reorder_scale(jnp.asarray(b_ih, jnp.float32)
                             + jnp.asarray(b_hh, jnp.float32))  # (4H,) f32
        inputs.append(w_ih_t)
        inputs.append(w_hh_t)
        inputs.append(bias[None, :])                            # (1, 4H) f32

    fc_w_T = jnp.zeros((H, O_pad), jnp.float32).at[:, :output_size].set(
        jnp.asarray(fc_w, jnp.float32).T)
    fc_b_p = jnp.zeros((1, O_pad), jnp.float32).at[0, :output_size].set(
        jnp.asarray(fc_b, jnp.float32))
    inputs.append(fc_w_T.astype(jnp.bfloat16))
    inputs.append(fc_b_p)

    in_specs = [
        pl.BlockSpec(a.shape, lambda i, nd=a.ndim: (0,) * nd) for a in inputs
    ]
    kernel = functools.partial(lstm_fc_kernel, num_layers, H, Bp, T)

    # NOTE: at B=2 a single TensorCore is the right choice; if B grows past one
    # tile, add a leading "parallel" grid axis over batch tiles so both TCs on
    # v7x are used.
    out = pl.pallas_call(
        kernel,
        out_shape=jax.ShapeDtypeStruct((Bp, O_pad), jnp.float32),
        grid=(1,),
        in_specs=in_specs,
        out_specs=pl.BlockSpec((Bp, O_pad), lambda i: (0, 0)),
        compiler_params=pltpu.CompilerParams(
            dimension_semantics=("arbitrary",)
        ),
    )(*inputs)
    return out[:B, :output_size]


def lstm_model_reference(x, lstm_params, fc_w, fc_b, hidden_size):
    """Pure-JAX f32 reference matching PyTorch nn.LSTM + nn.Linear semantics."""
    B, T, _ = x.shape
    H = hidden_size
    layer_in = x
    h = None
    for (w_ih, w_hh, b_ih, b_hh) in lstm_params:
        h = jnp.zeros((B, H), jnp.float32)
        c = jnp.zeros((B, H), jnp.float32)
        outs = []
        for t in range(T):
            g = layer_in[:, t, :] @ w_ih.T + h @ w_hh.T + b_ih + b_hh
            i_g = jax.nn.sigmoid(g[:, 0:H])
            f_g = jax.nn.sigmoid(g[:, H:2 * H])
            g_g = jnp.tanh(g[:, 2 * H:3 * H])
            o_g = jax.nn.sigmoid(g[:, 3 * H:4 * H])
            c = f_g * c + i_g * g_g
            h = o_g * jnp.tanh(c)
            outs.append(h)
        layer_in = jnp.stack(outs, axis=1)
    return h @ fc_w.T + fc_b


if __name__ == "__main__":
    # Small shapes consistent with the module's forward pass.
    B, T = 2, 8
    input_size, hidden_size, num_layers, output_size = 16, 32, 2, 8

    key = jax.random.PRNGKey(0)
    bound = 1.0 / math.sqrt(hidden_size)

    def uinit(k, shape):
        return jax.random.uniform(k, shape, jnp.float32, -bound, bound)

    keys = jax.random.split(key, 4 * num_layers + 3)
    lstm_params = []
    for l in range(num_layers):
        d_in = input_size if l == 0 else hidden_size
        k0, k1, k2, k3 = keys[4 * l:4 * l + 4]
        lstm_params.append((
            uinit(k0, (4 * hidden_size, d_in)),         # weight_ih_l{l}
            uinit(k1, (4 * hidden_size, hidden_size)),  # weight_hh_l{l}
            uinit(k2, (4 * hidden_size,)),              # bias_ih_l{l}
            uinit(k3, (4 * hidden_size,)),              # bias_hh_l{l}
        ))
    fc_w = uinit(keys[-3], (output_size, hidden_size))
    fc_b = uinit(keys[-2], (output_size,))

    x = jax.random.normal(keys[-1], (B, T, input_size), jnp.float32)

    out = lstm_model_forward(x, lstm_params, fc_w, fc_b, hidden_size, output_size)
    out = jax.block_until_ready(out)

    ref = lstm_model_reference(x, lstm_params, fc_w, fc_b, hidden_size)
    assert out.shape == (B, output_size)
    # bf16 MXU operands (f32 accumulation) vs pure-f32 reference.
    assert jnp.allclose(out, ref, atol=5e-2, rtol=5e-2), "mismatch vs reference"

    print("KERNEL_OK")
</pallas_src>

<mosaic_0001>
module attributes {stable_mosaic.version = 11 : i64} {
  func.func @lstm_fc_kernel(%arg0: i32, %arg1: memref<64x16xbf16, #tpu.memory_space<vmem>>, %arg2: memref<16x128xbf16, #tpu.memory_space<vmem>>, %arg3: memref<32x128xbf16, #tpu.memory_space<vmem>>, %arg4: memref<1x128xf32, #tpu.memory_space<vmem>>, %arg5: memref<32x128xbf16, #tpu.memory_space<vmem>>, %arg6: memref<32x128xbf16, #tpu.memory_space<vmem>>, %arg7: memref<1x128xf32, #tpu.memory_space<vmem>>, %arg8: memref<32x128xbf16, #tpu.memory_space<vmem>>, %arg9: memref<1x128xf32, #tpu.memory_space<vmem>>, %arg10: memref<8x128xf32, #tpu.memory_space<vmem>>) attributes {dimension_semantics = [#tpu.dimension_semantics<arbitrary>], iteration_bounds = array<i64: 1>, scalar_prefetch = 0 : i64, scratch_operands = 0 : i64, tpu.core_type = #tpu.core_type<tc>, window_params = [{pipeline_mode = #tpu.pipeline_mode<synchronous>, transform_indices = @transform_0, window_bounds = array<i64: 64, 16>}, {pipeline_mode = #tpu.pipeline_mode<synchronous>, transform_indices = @transform_1, window_bounds = array<i64: 16, 128>}, {pipeline_mode = #tpu.pipeline_mode<synchronous>, transform_indices = @transform_2, window_bounds = array<i64: 32, 128>}, {pipeline_mode = #tpu.pipeline_mode<synchronous>, transform_indices = @transform_3, window_bounds = array<i64: 1, 128>}, {pipeline_mode = #tpu.pipeline_mode<synchronous>, transform_indices = @transform_4, window_bounds = array<i64: 32, 128>}, {pipeline_mode = #tpu.pipeline_mode<synchronous>, transform_indices = @transform_5, window_bounds = array<i64: 32, 128>}, {pipeline_mode = #tpu.pipeline_mode<synchronous>, transform_indices = @transform_6, window_bounds = array<i64: 1, 128>}, {pipeline_mode = #tpu.pipeline_mode<synchronous>, transform_indices = @transform_7, window_bounds = array<i64: 32, 128>}, {pipeline_mode = #tpu.pipeline_mode<synchronous>, transform_indices = @transform_8, window_bounds = array<i64: 1, 128>}, {pipeline_mode = #tpu.pipeline_mode<synchronous>, transform_indices = @transform_9, window_bounds = array<i64: 8, 128>}]} {
    %c0 = arith.constant 0 : index
    %c0_0 = arith.constant 0 : index
    %0 = vector.load %arg2[%c0, %c0_0] : memref<16x128xbf16, #tpu.memory_space<vmem>>, vector<16x128xbf16>
    %c0_1 = arith.constant 0 : index
    %c0_2 = arith.constant 0 : index
    %1 = vector.load %arg5[%c0_1, %c0_2] : memref<32x128xbf16, #tpu.memory_space<vmem>>, vector<32x128xbf16>
    %c0_3 = arith.constant 0 : index
    %c0_4 = arith.constant 0 : index
    %2 = vector.load %arg3[%c0_3, %c0_4] : memref<32x128xbf16, #tpu.memory_space<vmem>>, vector<32x128xbf16>
    %c0_5 = arith.constant 0 : index
    %c0_6 = arith.constant 0 : index
    %3 = vector.load %arg6[%c0_5, %c0_6] : memref<32x128xbf16, #tpu.memory_space<vmem>>, vector<32x128xbf16>
    %c0_7 = arith.constant 0 : index
    %c0_8 = arith.constant 0 : index
    %4 = vector.load %arg4[%c0_7, %c0_8] : memref<1x128xf32, #tpu.memory_space<vmem>>, vector<1x128xf32>
    %c0_9 = arith.constant 0 : index
    %c0_10 = arith.constant 0 : index
    %5 = vector.load %arg7[%c0_9, %c0_10] : memref<1x128xf32, #tpu.memory_space<vmem>>, vector<1x128xf32>
    %c0_11 = arith.constant 0 : index
    %c0_12 = arith.constant 0 : index
    %6 = vector.load %arg1[%c0_11, %c0_12] : memref<64x16xbf16, #tpu.memory_space<vmem>>, vector<64x16xbf16>
    %cst = arith.constant dense<0.000000e+00> : vector<64x128xf32>
    %7 = tpu.matmul %6, %0, %cst {dimension_numbers = #tpu.dot_dimension_numbers<[1], [0], [0], [1], [0, 0, 1, 1], [], []>} : vector<64x16xbf16>, vector<16x128xbf16>, vector<64x128xf32> -> vector<64x128xf32>
    %8 = vector.broadcast %4 : vector<1x128xf32> to vector<64x128xf32>
    %9 = arith.addf %7, %8 : vector<64x128xf32>
    %cst_13 = arith.constant 0.000000e+00 : f32
    %10 = vector.broadcast %cst_13 : f32 to vector<8x32xf32>
    %cst_14 = arith.constant 0.000000e+00 : f32
    %11 = vector.broadcast %cst_14 : f32 to vector<8x32xf32>
    %cst_15 = arith.constant 0.000000e+00 : f32
    %12 = vector.broadcast %cst_15 : f32 to vector<8x32xf32>
    %cst_16 = arith.constant 0.000000e+00 : f32
    %13 = vector.broadcast %cst_16 : f32 to vector<8x32xf32>
    %14 = vector.extract_strided_slice %9 {offsets = [0, 0], sizes = [8, 128], strides = [1, 1]} : vector<64x128xf32> to vector<8x128xf32>
    %15 = arith.truncf %10 : vector<8x32xf32> to vector<8x32xbf16>
    %cst_17 = arith.constant dense<0.000000e+00> : vector<8x128xf32>
    %16 = tpu.matmul %15, %2, %cst_17 {dimension_numbers = #tpu.dot_dimension_numbers<[1], [0], [0], [1], [0, 0, 1, 1], [], []>} : vector<8x32xbf16>, vector<32x128xbf16>, vector<8x128xf32> -> vector<8x128xf32>
    %17 = arith.addf %14, %16 : vector<8x128xf32>
    %18 = math.tanh %17 : vector<8x128xf32>
    %19 = vector.extract_strided_slice %18 {offsets = [0, 0], sizes = [8, 96], strides = [1, 1]} : vector<8x128xf32> to vector<8x96xf32>
    %cst_18 = arith.constant 5.000000e-01 : f32
    %20 = vector.broadcast %cst_18 : f32 to vector<8x96xf32>
    %21 = arith.mulf %20, %19 : vector<8x96xf32>
    %cst_19 = arith.constant 5.000000e-01 : f32
    %22 = vector.broadcast %cst_19 : f32 to vector<8x96xf32>
    %23 = arith.addf %21, %22 : vector<8x96xf32>
    %24 = vector.extract_strided_slice %23 {offsets = [0, 0], sizes = [8, 32], strides = [1, 1]} : vector<8x96xf32> to vector<8x32xf32>
    %25 = vector.extract_strided_slice %23 {offsets = [0, 32], sizes = [8, 32], strides = [1, 1]} : vector<8x96xf32> to vector<8x32xf32>
    %26 = vector.extract_strided_slice %23 {offsets = [0, 64], sizes = [8, 32], strides = [1, 1]} : vector<8x96xf32> to vector<8x32xf32>
    %27 = vector.extract_strided_slice %18 {offsets = [0, 96], sizes = [8, 32], strides = [1, 1]} : vector<8x128xf32> to vector<8x32xf32>
    %28 = arith.mulf %25, %12 : vector<8x32xf32>
    %29 = arith.mulf %24, %27 : vector<8x32xf32>
    %30 = arith.addf %28, %29 : vector<8x32xf32>
    %31 = math.tanh %30 : vector<8x32xf32>
    %32 = arith.mulf %26, %31 : vector<8x32xf32>
    %33 = arith.truncf %32 : vector<8x32xf32> to vector<8x32xbf16>
    %cst_20 = arith.constant dense<0.000000e+00> : vector<8x128xf32>
    %34 = tpu.matmul %33, %1, %cst_20 {dimension_numbers = #tpu.dot_dimension_numbers<[1], [0], [0], [1], [0, 0, 1, 1], [], []>} : vector<8x32xbf16>, vector<32x128xbf16>, vector<8x128xf32> -> vector<8x128xf32>
    %35 = vector.broadcast %5 : vector<1x128xf32> to vector<8x128xf32>
    %36 = arith.addf %34, %35 : vector<8x128xf32>
    %37 = arith.truncf %11 : vector<8x32xf32> to vector<8x32xbf16>
    %cst_21 = arith.constant dense<0.000000e+00> : vector<8x128xf32>
    %38 = tpu.matmul %37, %3, %cst_21 {dimension_numbers = #tpu.dot_dimension_numbers<[1], [0], [0], [1], [0, 0, 1, 1], [], []>} : vector<8x32xbf16>, vector<32x128xbf16>, vector<8x128xf32> -> vector<8x128xf32>
    %39 = arith.addf %36, %38 : vector<8x128xf32>
    %40 = math.tanh %39 : vector<8x128xf32>
    %41 = vector.extract_strided_slice %40 {offsets = [0, 0], sizes = [8, 96], strides = [1, 1]} : vector<8x128xf32> to vector<8x96xf32>
    %cst_22 = arith.constant 5.000000e-01 : f32
    %42 = vector.broadcast %cst_22 : f32 to vector<8x96xf32>
    %43 = arith.mulf %42, %41 : vector<8x96xf32>
    %cst_23 = arith.constant 5.000000e-01 : f32
    %44 = vector.broadcast %cst_23 : f32 to vector<8x96xf32>
    %45 = arith.addf %43, %44 : vector<8x96xf32>
    %46 = vector.extract_strided_slice %45 {offsets = [0, 0], sizes = [8, 32], strides = [1, 1]} : vector<8x96xf32> to vector<8x32xf32>
    %47 = vector.extract_strided_slice %45 {offsets = [0, 32], sizes = [8, 32], strides = [1, 1]} : vector<8x96xf32> to vector<8x32xf32>
    %48 = vector.extract_strided_slice %45 {offsets = [0, 64], sizes = [8, 32], strides = [1, 1]} : vector<8x96xf32> to vector<8x32xf32>
    %49 = vector.extract_strided_slice %40 {offsets = [0, 96], sizes = [8, 32], strides = [1, 1]} : vector<8x128xf32> to vector<8x32xf32>
    %50 = arith.mulf %47, %13 : vector<8x32xf32>
    %51 = arith.mulf %46, %49 : vector<8x32xf32>
    %52 = arith.addf %50, %51 : vector<8x32xf32>
    %53 = math.tanh %52 : vector<8x32xf32>
    %54 = arith.mulf %48, %53 : vector<8x32xf32>
    %55 = vector.extract_strided_slice %9 {offsets = [8, 0], sizes = [8, 128], strides = [1, 1]} : vector<64x128xf32> to vector<8x128xf32>
    %56 = arith.truncf %32 : vector<8x32xf32> to vector<8x32xbf16>
    %cst_24 = arith.constant dense<0.000000e+00> : vector<8x128xf32>
    %57 = tpu.matmul %56, %2, %cst_24 {dimension_numbers = #tpu.dot_dimension_numbers<[1], [0], [0], [1], [0, 0, 1, 1], [], []>} : vector<8x32xbf16>, vector<32x128xbf16>, vector<8x128xf32> -> vector<8x128xf32>
    %58 = arith.addf %55, %57 : vector<8x128xf32>
    %59 = math.tanh %58 : vector<8x128xf32>
    %60 = vector.extract_strided_slice %59 {offsets = [0, 0], sizes = [8, 96], strides = [1, 1]} : vector<8x128xf32> to vector<8x96xf32>
    %cst_25 = arith.constant 5.000000e-01 : f32
    %61 = vector.broadcast %cst_25 : f32 to vector<8x96xf32>
    %62 = arith.mulf %61, %60 : vector<8x96xf32>
    %cst_26 = arith.constant 5.000000e-01 : f32
    %63 = vector.broadcast %cst_26 : f32 to vector<8x96xf32>
    %64 = arith.addf %62, %63 : vector<8x96xf32>
    %65 = vector.extract_strided_slice %64 {offsets = [0, 0], sizes = [8, 32], strides = [1, 1]} : vector<8x96xf32> to vector<8x32xf32>
    %66 = vector.extract_strided_slice %64 {offsets = [0, 32], sizes = [8, 32], strides = [1, 1]} : vector<8x96xf32> to vector<8x32xf32>
    %67 = vector.extract_strided_slice %64 {offsets = [0, 64], sizes = [8, 32], strides = [1, 1]} : vector<8x96xf32> to vector<8x32xf32>
    %68 = vector.extract_strided_slice %59 {offsets = [0, 96], sizes = [8, 32], strides = [1, 1]} : vector<8x128xf32> to vector<8x32xf32>
    %69 = arith.mulf %66, %30 : vector<8x32xf32>
    %70 = arith.mulf %65, %68 : vector<8x32xf32>
    %71 = arith.addf %69, %70 : vector<8x32xf32>
    %72 = math.tanh %71 : vector<8x32xf32>
    %73 = arith.mulf %67, %72 : vector<8x32xf32>
    %74 = arith.truncf %73 : vector<8x32xf32> to vector<8x32xbf16>
    %cst_27 = arith.constant dense<0.000000e+00> : vector<8x128xf32>
    %75 = tpu.matmul %74, %1, %cst_27 {dimension_numbers = #tpu.dot_dimension_numbers<[1], [0], [0], [1], [0, 0, 1, 1], [], []>} : vector<8x32xbf16>, vector<32x128xbf16>, vector<8x128xf32> -> vector<8x128xf32>
    %76 = vector.broadcast %5 : vector<1x128xf32> to vector<8x128xf32>
    %77 = arith.addf %75, %76 : vector<8x128xf32>
    %78 = arith.truncf %54 : vector<8x32xf32> to vector<8x32xbf16>
    %cst_28 = arith.constant dense<0.000000e+00> : vector<8x128xf32>
    %79 = tpu.matmul %78, %3, %cst_28 {dimension_numbers = #tpu.dot_dimension_numbers<[1], [0], [0], [1], [0, 0, 1, 1], [], []>} : vector<8x32xbf16>, vector<32x128xbf16>, vector<8x128xf32> -> vector<8x128xf32>
    %80 = arith.addf %77, %79 : vector<8x128xf32>
    %81 = math.tanh %80 : vector<8x128xf32>
    %82 = vector.extract_strided_slice %81 {offsets = [0, 0], sizes = [8, 96], strides = [1, 1]} : vector<8x128xf32> to vector<8x96xf32>
    %cst_29 = arith.constant 5.000000e-01 : f32
    %83 = vector.broadcast %cst_29 : f32 to vector<8x96xf32>
    %84 = arith.mulf %83, %82 : vector<8x96xf32>
    %cst_30 = arith.constant 5.000000e-01 : f32
    %85 = vector.broadcast %cst_30 : f32 to vector<8x96xf32>
    %86 = arith.addf %84, %85 : vector<8x96xf32>
    %87 = vector.extract_strided_slice %86 {offsets = [0, 0], sizes = [8, 32], strides = [1, 1]} : vector<8x96xf32> to vector<8x32xf32>
    %88 = vector.extract_strided_slice %86 {offsets = [0, 32], sizes = [8, 32], strides = [1, 1]} : vector<8x96xf32> to vector<8x32xf32>
    %89 = vector.extract_strided_slice %86 {offsets = [0, 64], sizes = [8, 32], strides = [1, 1]} : vector<8x96xf32> to vector<8x32xf32>
    %90 = vector.extract_strided_slice %81 {offsets = [0, 96], sizes = [8, 32], strides = [1, 1]} : vector<8x128xf32> to vector<8x32xf32>
    %91 = arith.mulf %88, %52 : vector<8x32xf32>
    %92 = arith.mulf %87, %90 : vector<8x32xf32>
    %93 = arith.addf %91, %92 : vector<8x32xf32>
    %94 = math.tanh %93 : vector<8x32xf32>
    %95 = arith.mulf %89, %94 : vector<8x32xf32>
    %96 = vector.extract_strided_slice %9 {offsets = [16, 0], sizes = [8, 128], strides = [1, 1]} : vector<64x128xf32> to vector<8x128xf32>
    %97 = arith.truncf %73 : vector<8x32xf32> to vector<8x32xbf16>
    %cst_31 = arith.constant dense<0.000000e+00> : vector<8x128xf32>
    %98 = tpu.matmul %97, %2, %cst_31 {dimension_numbers = #tpu.dot_dimension_numbers<[1], [0], [0], [1], [0, 0, 1, 1], [], []>} : vector<8x32xbf16>, vector<32x128xbf16>, vector<8x128xf32> -> vector<8x128xf32>
    %99 = arith.addf %96, %98 : vector<8x128xf32>
    %100 = math.tanh %99 : vector<8x128xf32>
    %101 = vector.extract_strided_slice %100 {offsets = [0, 0], sizes = [8, 96], strides = [1, 1]} : vector<8x128xf32> to vector<8x96xf32>
    %cst_32 = arith.constant 5.000000e-01 : f32
    %102 = vector.broadcast %cst_32 : f32 to vector<8x96xf32>
    %103 = arith.mulf %102, %101 : vector<8x96xf32>
    %cst_33 = arith.constant 5.000000e-01 : f32
    %104 = vector.broadcast %cst_33 : f32 to vector<8x96xf32>
    %105 = arith.addf %103, %104 : vector<8x96xf32>
    %106 = vector.extract_strided_slice %105 {offsets = [0, 0], sizes = [8, 32], strides = [1, 1]} : vector<8x96xf32> to vector<8x32xf32>
    %107 = vector.extract_strided_slice %105 {offsets = [0, 32], sizes = [8, 32], strides = [1, 1]} : vector<8x96xf32> to vector<8x32xf32>
    %108 = vector.extract_strided_slice %105 {offsets = [0, 64], sizes = [8, 32], strides = [1, 1]} : vector<8x96xf32> to vector<8x32xf32>
    %109 = vector.extract_strided_slice %100 {offsets = [0, 96], sizes = [8, 32], strides = [1, 1]} : vector<8x128xf32> to vector<8x32xf32>
    %110 = arith.mulf %107, %71 : vector<8x32xf32>
    %111 = arith.mulf %106, %109 : vector<8x32xf32>
    %112 = arith.addf %110, %111 : vector<8x32xf32>
    %113 = math.tanh %112 : vector<8x32xf32>
    %114 = arith.mulf %108, %113 : vector<8x32xf32>
    %115 = arith.truncf %114 : vector<8x32xf32> to vector<8x32xbf16>
    %cst_34 = arith.constant dense<0.000000e+00> : vector<8x128xf32>
    %116 = tpu.matmul %115, %1, %cst_34 {dimension_numbers = #tpu.dot_dimension_numbers<[1], [0], [0], [1], [0, 0, 1, 1], [], []>} : vector<8x32xbf16>, vector<32x128xbf16>, vector<8x128xf32> -> vector<8x128xf32>
    %117 = vector.broadcast %5 : vector<1x128xf32> to vector<8x128xf32>
    %118 = arith.addf %116, %117 : vector<8x128xf32>
    %119 = arith.truncf %95 : vector<8x32xf32> to vector<8x32xbf16>
    %cst_35 = arith.constant dense<0.000000e+00> : vector<8x128xf32>
    %120 = tpu.matmul %119, %3, %cst_35 {dimension_numbers = #tpu.dot_dimension_numbers<[1], [0], [0], [1], [0, 0, 1, 1], [], []>} : vector<8x32xbf16>, vector<32x128xbf16>, vector<8x128xf32> -> vector<8x128xf32>
    %121 = arith.addf %118, %120 : vector<8x128xf32>
    %122 = math.tanh %121 : vector<8x128xf32>
    %123 = vector.extract_strided_slice %122 {offsets = [0, 0], sizes = [8, 96], strides = [1, 1]} : vector<8x128xf32> to vector<8x96xf32>
    %cst_36 = arith.constant 5.000000e-01 : f32
    %124 = vector.broadcast %cst_36 : f32 to vector<8x96xf32>
    %125 = arith.mulf %124, %123 : vector<8x96xf32>
    %cst_37 = arith.constant 5.000000e-01 : f32
    %126 = vector.broadcast %cst_37 : f32 to vector<8x96xf32>
    %127 = arith.addf %125, %126 : vector<8x96xf32>
    %128 = vector.extract_strided_slice %127 {offsets = [0, 0], sizes = [8, 32], strides = [1, 1]} : vector<8x96xf32> to vector<8x32xf32>
    %129 = vector.extract_strided_slice %127 {offsets = [0, 32], sizes = [8, 32], strides = [1, 1]} : vector<8x96xf32> to vector<8x32xf32>
    %130 = vector.extract_strided_slice %127 {offsets = [0, 64], sizes = [8, 32], strides = [1, 1]} : vector<8x96xf32> to vector<8x32xf32>
    %131 = vector.extract_strided_slice %122 {offsets = [0, 96], sizes = [8, 32], strides = [1, 1]} : vector<8x128xf32> to vector<8x32xf32>
    %132 = arith.mulf %129, %93 : vector<8x32xf32>
    %133 = arith.mulf %128, %131 : vector<8x32xf32>
    %134 = arith.addf %132, %133 : vector<8x32xf32>
    %135 = math.tanh %134 : vector<8x32xf32>
    %136 = arith.mulf %130, %135 : vector<8x32xf32>
    %137 = vector.extract_strided_slice %9 {offsets = [24, 0], sizes = [8, 128], strides = [1, 1]} : vector<64x128xf32> to vector<8x128xf32>
    %138 = arith.truncf %114 : vector<8x32xf32> to vector<8x32xbf16>
    %cst_38 = arith.constant dense<0.000000e+00> : vector<8x128xf32>
    %139 = tpu.matmul %138, %2, %cst_38 {dimension_numbers = #tpu.dot_dimension_numbers<[1], [0], [0], [1], [0, 0, 1, 1], [], []>} : vector<8x32xbf16>, vector<32x128xbf16>, vector<8x128xf32> -> vector<8x128xf32>
    %140 = arith.addf %137, %139 : vector<8x128xf32>
    %141 = math.tanh %140 : vector<8x128xf32>
    %142 = vector.extract_strided_slice %141 {offsets = [0, 0], sizes = [8, 96], strides = [1, 1]} : vector<8x128xf32> to vector<8x96xf32>
    %cst_39 = arith.constant 5.000000e-01 : f32
    %143 = vector.broadcast %cst_39 : f32 to vector<8x96xf32>
    %144 = arith.mulf %143, %142 : vector<8x96xf32>
    %cst_40 = arith.constant 5.000000e-01 : f32
    %145 = vector.broadcast %cst_40 : f32 to vector<8x96xf32>
    %146 = arith.addf %144, %145 : vector<8x96xf32>
    %147 = vector.extract_strided_slice %146 {offsets = [0, 0], sizes = [8, 32], strides = [1, 1]} : vector<8x96xf32> to vector<8x32xf32>
    %148 = vector.extract_strided_slice %146 {offsets = [0, 32], sizes = [8, 32], strides = [1, 1]} : vector<8x96xf32> to vector<8x32xf32>
    %149 = vector.extract_strided_slice %146 {offsets = [0, 64], sizes = [8, 32], strides = [1, 1]} : vector<8x96xf32> to vector<8x32xf32>
    %150 = vector.extract_strided_slice %141 {offsets = [0, 96], sizes = [8, 32], strides = [1, 1]} : vector<8x128xf32> to vector<8x32xf32>
    %151 = arith.mulf %148, %112 : vector<8x32xf32>
    %152 = arith.mulf %147, %150 : vector<8x32xf32>
    %153 = arith.addf %151, %152 : vector<8x32xf32>
    %154 = math.tanh %153 : vector<8x32xf32>
    %155 = arith.mulf %149, %154 : vector<8x32xf32>
    %156 = arith.truncf %155 : vector<8x32xf32> to vector<8x32xbf16>
    %cst_41 = arith.constant dense<0.000000e+00> : vector<8x128xf32>
    %157 = tpu.matmul %156, %1, %cst_41 {dimension_numbers = #tpu.dot_dimension_numbers<[1], [0], [0], [1], [0, 0, 1, 1], [], []>} : vector<8x32xbf16>, vector<32x128xbf16>, vector<8x128xf32> -> vector<8x128xf32>
    %158 = vector.broadcast %5 : vector<1x128xf32> to vector<8x128xf32>
    %159 = arith.addf %157, %158 : vector<8x128xf32>
    %160 = arith.truncf %136 : vector<8x32xf32> to vector<8x32xbf16>
    %cst_42 = arith.constant dense<0.000000e+00> : vector<8x128xf32>
    %161 = tpu.matmul %160, %3, %cst_42 {dimension_numbers = #tpu.dot_dimension_numbers<[1], [0], [0], [1], [0, 0, 1, 1], [], []>} : vector<8x32xbf16>, vector<32x128xbf16>, vector<8x128xf32> -> vector<8x128xf32>
    %162 = arith.addf %159, %161 : vector<8x128xf32>
    %163 = math.tanh %162 : vector<8x128xf32>
    %164 = vector.extract_strided_slice %163 {offsets = [0, 0], sizes = [8, 96], strides = [1, 1]} : vector<8x128xf32> to vector<8x96xf32>
    %cst_43 = arith.constant 5.000000e-01 : f32
    %165 = vector.broadcast %cst_43 : f32 to vector<8x96xf32>
    %166 = arith.mulf %165, %164 : vector<8x96xf32>
    %cst_44 = arith.constant 5.000000e-01 : f32
    %167 = vector.broadcast %cst_44 : f32 to vector<8x96xf32>
    %168 = arith.addf %166, %167 : vector<8x96xf32>
    %169 = vector.extract_strided_slice %168 {offsets = [0, 0], sizes = [8, 32], strides = [1, 1]} : vector<8x96xf32> to vector<8x32xf32>
    %170 = vector.extract_strided_slice %168 {offsets = [0, 32], sizes = [8, 32], strides = [1, 1]} : vector<8x96xf32> to vector<8x32xf32>
    %171 = vector.extract_strided_slice %168 {offsets = [0, 64], sizes = [8, 32], strides = [1, 1]} : vector<8x96xf32> to vector<8x32xf32>
    %172 = vector.extract_strided_slice %163 {offsets = [0, 96], sizes = [8, 32], strides = [1, 1]} : vector<8x128xf32> to vector<8x32xf32>
    %173 = arith.mulf %170, %134 : vector<8x32xf32>
    %174 = arith.mulf %169, %172 : vector<8x32xf32>
    %175 = arith.addf %173, %174 : vector<8x32xf32>
    %176 = math.tanh %175 : vector<8x32xf32>
    %177 = arith.mulf %171, %176 : vector<8x32xf32>
    %178 = vector.extract_strided_slice %9 {offsets = [32, 0], sizes = [8, 128], strides = [1, 1]} : vector<64x128xf32> to vector<8x128xf32>
    %179 = arith.truncf %155 : vector<8x32xf32> to vector<8x32xbf16>
    %cst_45 = arith.constant dense<0.000000e+00> : vector<8x128xf32>
    %180 = tpu.matmul %179, %2, %cst_45 {dimension_numbers = #tpu.dot_dimension_numbers<[1], [0], [0], [1], [0, 0, 1, 1], [], []>} : vector<8x32xbf16>, vector<32x128xbf16>, vector<8x128xf32> -> vector<8x128xf32>
    %181 = arith.addf %178, %180 : vector<8x128xf32>
    %182 = math.tanh %181 : vector<8x128xf32>
    %183 = vector.extract_strided_slice %182 {offsets = [0, 0], sizes = [8, 96], strides = [1, 1]} : vector<8x128xf32> to vector<8x96xf32>
    %cst_46 = arith.constant 5.000000e-01 : f32
    %184 = vector.broadcast %cst_46 : f32 to vector<8x96xf32>
    %185 = arith.mulf %184, %183 : vector<8x96xf32>
    %cst_47 = arith.constant 5.000000e-01 : f32
    %186 = vector.broadcast %cst_47 : f32 to vector<8x96xf32>
    %187 = arith.addf %185, %186 : vector<8x96xf32>
    %188 = vector.extract_strided_slice %187 {offsets = [0, 0], sizes = [8, 32], strides = [1, 1]} : vector<8x96xf32> to vector<8x32xf32>
    %189 = vector.extract_strided_slice %187 {offsets = [0, 32], sizes = [8, 32], strides = [1, 1]} : vector<8x96xf32> to vector<8x32xf32>
    %190 = vector.extract_strided_slice %187 {offsets = [0, 64], sizes = [8, 32], strides = [1, 1]} : vector<8x96xf32> to vector<8x32xf32>
    %191 = vector.extract_strided_slice %182 {offsets = [0, 96], sizes = [8, 32], strides = [1, 1]} : vector<8x128xf32> to vector<8x32xf32>
    %192 = arith.mulf %189, %153 : vector<8x32xf32>
    %193 = arith.mulf %188, %191 : vector<8x32xf32>
    %194 = arith.addf %192, %193 : vector<8x32xf32>
    %195 = math.tanh %194 : vector<8x32xf32>
    %196 = arith.mulf %190, %195 : vector<8x32xf32>
    %197 = arith.truncf %196 : vector<8x32xf32> to vector<8x32xbf16>
    %cst_48 = arith.constant dense<0.000000e+00> : vector<8x128xf32>
    %198 = tpu.matmul %197, %1, %cst_48 {dimension_numbers = #tpu.dot_dimension_numbers<[1], [0], [0], [1], [0, 0, 1, 1], [], []>} : vector<8x32xbf16>, vector<32x128xbf16>, vector<8x128xf32> -> vector<8x128xf32>
    %199 = vector.broadcast %5 : vector<1x128xf32> to vector<8x128xf32>
    %200 = arith.addf %198, %199 : vector<8x128xf32>
    %201 = arith.truncf %177 : vector<8x32xf32> to vector<8x32xbf16>
    %cst_49 = arith.constant dense<0.000000e+00> : vector<8x128xf32>
    %202 = tpu.matmul %201, %3, %cst_49 {dimension_numbers = #tpu.dot_dimension_numbers<[1], [0], [0], [1], [0, 0, 1, 1], [], []>} : vector<8x32xbf16>, vector<32x128xbf16>, vector<8x128xf32> -> vector<8x128xf32>
    %203 = arith.addf %200, %202 : vector<8x128xf32>
    %204 = math.tanh %203 : vector<8x128xf32>
    %205 = vector.extract_strided_slice %204 {offsets = [0, 0], sizes = [8, 96], strides = [1, 1]} : vector<8x128xf32> to vector<8x96xf32>
    %cst_50 = arith.constant 5.000000e-01 : f32
    %206 = vector.broadcast %cst_50 : f32 to vector<8x96xf32>
    %207 = arith.mulf %206, %205 : vector<8x96xf32>
    %cst_51 = arith.constant 5.000000e-01 : f32
    %208 = vector.broadcast %cst_51 : f32 to vector<8x96xf32>
    %209 = arith.addf %207, %208 : vector<8x96xf32>
    %210 = vector.extract_strided_slice %209 {offsets = [0, 0], sizes = [8, 32], strides = [1, 1]} : vector<8x96xf32> to vector<8x32xf32>
    %211 = vector.extract_strided_slice %209 {offsets = [0, 32], sizes = [8, 32], strides = [1, 1]} : vector<8x96xf32> to vector<8x32xf32>
    %212 = vector.extract_strided_slice %209 {offsets = [0, 64], sizes = [8, 32], strides = [1, 1]} : vector<8x96xf32> to vector<8x32xf32>
    %213 = vector.extract_strided_slice %204 {offsets = [0, 96], sizes = [8, 32], strides = [1, 1]} : vector<8x128xf32> to vector<8x32xf32>
    %214 = arith.mulf %211, %175 : vector<8x32xf32>
    %215 = arith.mulf %210, %213 : vector<8x32xf32>
    %216 = arith.addf %214, %215 : vector<8x32xf32>
    %217 = math.tanh %216 : vector<8x32xf32>
    %218 = arith.mulf %212, %217 : vector<8x32xf32>
    %219 = vector.extract_strided_slice %9 {offsets = [40, 0], sizes = [8, 128], strides = [1, 1]} : vector<64x128xf32> to vector<8x128xf32>
    %220 = arith.truncf %196 : vector<8x32xf32> to vector<8x32xbf16>
    %cst_52 = arith.constant dense<0.000000e+00> : vector<8x128xf32>
    %221 = tpu.matmul %220, %2, %cst_52 {dimension_numbers = #tpu.dot_dimension_numbers<[1], [0], [0], [1], [0, 0, 1, 1], [], []>} : vector<8x32xbf16>, vector<32x128xbf16>, vector<8x128xf32> -> vector<8x128xf32>
    %222 = arith.addf %219, %221 : vector<8x128xf32>
    %223 = math.tanh %222 : vector<8x128xf32>
    %224 = vector.extract_strided_slice %223 {offsets = [0, 0], sizes = [8, 96], strides = [1, 1]} : vector<8x128xf32> to vector<8x96xf32>
    %cst_53 = arith.constant 5.000000e-01 : f32
    %225 = vector.broadcast %cst_53 : f32 to vector<8x96xf32>
    %226 = arith.mulf %225, %224 : vector<8x96xf32>
    %cst_54 = arith.constant 5.000000e-01 : f32
    %227 = vector.broadcast %cst_54 : f32 to vector<8x96xf32>
    %228 = arith.addf %226, %227 : vector<8x96xf32>
    %229 = vector.extract_strided_slice %228 {offsets = [0, 0], sizes = [8, 32], strides = [1, 1]} : vector<8x96xf32> to vector<8x32xf32>
    %230 = vector.extract_strided_slice %228 {offsets = [0, 32], sizes = [8, 32], strides = [1, 1]} : vector<8x96xf32> to vector<8x32xf32>
    %231 = vector.extract_strided_slice %228 {offsets = [0, 64], sizes = [8, 32], strides = [1, 1]} : vector<8x96xf32> to vector<8x32xf32>
    %232 = vector.extract_strided_slice %223 {offsets = [0, 96], sizes = [8, 32], strides = [1, 1]} : vector<8x128xf32> to vector<8x32xf32>
    %233 = arith.mulf %230, %194 : vector<8x32xf32>
    %234 = arith.mulf %229, %232 : vector<8x32xf32>
    %235 = arith.addf %233, %234 : vector<8x32xf32>
    %236 = math.tanh %235 : vector<8x32xf32>
    %237 = arith.mulf %231, %236 : vector<8x32xf32>
    %238 = arith.truncf %237 : vector<8x32xf32> to vector<8x32xbf16>
    %cst_55 = arith.constant dense<0.000000e+00> : vector<8x128xf32>
    %239 = tpu.matmul %238, %1, %cst_55 {dimension_numbers = #tpu.dot_dimension_numbers<[1], [0], [0], [1], [0, 0, 1, 1], [], []>} : vector<8x32xbf16>, vector<32x128xbf16>, vector<8x128xf32> -> vector<8x128xf32>
    %240 = vector.broadcast %5 : vector<1x128xf32> to vector<8x128xf32>
    %241 = arith.addf %239, %240 : vector<8x128xf32>
    %242 = arith.truncf %218 : vector<8x32xf32> to vector<8x32xbf16>
    %cst_56 = arith.constant dense<0.000000e+00> : vector<8x128xf32>
    %243 = tpu.matmul %242, %3, %cst_56 {dimension_numbers = #tpu.dot_dimension_numbers<[1], [0], [0], [1], [0, 0, 1, 1], [], []>} : vector<8x32xbf16>, vector<32x128xbf16>, vector<8x128xf32> -> vector<8x128xf32>
    %244 = arith.addf %241, %243 : vector<8x128xf32>
    %245 = math.tanh %244 : vector<8x128xf32>
    %246 = vector.extract_strided_slice %245 {offsets = [0, 0], sizes = [8, 96], strides = [1, 1]} : vector<8x128xf32> to vector<8x96xf32>
    %cst_57 = arith.constant 5.000000e-01 : f32
    %247 = vector.broadcast %cst_57 : f32 to vector<8x96xf32>
    %248 = arith.mulf %247, %246 : vector<8x96xf32>
    %cst_58 = arith.constant 5.000000e-01 : f32
    %249 = vector.broadcast %cst_58 : f32 to vector<8x96xf32>
    %250 = arith.addf %248, %249 : vector<8x96xf32>
    %251 = vector.extract_strided_slice %250 {offsets = [0, 0], sizes = [8, 32], strides = [1, 1]} : vector<8x96xf32> to vector<8x32xf32>
    %252 = vector.extract_strided_slice %250 {offsets = [0, 32], sizes = [8, 32], strides = [1, 1]} : vector<8x96xf32> to vector<8x32xf32>
    %253 = vector.extract_strided_slice %250 {offsets = [0, 64], sizes = [8, 32], strides = [1, 1]} : vector<8x96xf32> to vector<8x32xf32>
    %254 = vector.extract_strided_slice %245 {offsets = [0, 96], sizes = [8, 32], strides = [1, 1]} : vector<8x128xf32> to vector<8x32xf32>
    %255 = arith.mulf %252, %216 : vector<8x32xf32>
    %256 = arith.mulf %251, %254 : vector<8x32xf32>
    %257 = arith.addf %255, %256 : vector<8x32xf32>
    %258 = math.tanh %257 : vector<8x32xf32>
    %259 = arith.mulf %253, %258 : vector<8x32xf32>
    %260 = vector.extract_strided_slice %9 {offsets = [48, 0], sizes = [8, 128], strides = [1, 1]} : vector<64x128xf32> to vector<8x128xf32>
    %261 = arith.truncf %237 : vector<8x32xf32> to vector<8x32xbf16>
    %cst_59 = arith.constant dense<0.000000e+00> : vector<8x128xf32>
    %262 = tpu.matmul %261, %2, %cst_59 {dimension_numbers = #tpu.dot_dimension_numbers<[1], [0], [0], [1], [0, 0, 1, 1], [], []>} : vector<8x32xbf16>, vector<32x128xbf16>, vector<8x128xf32> -> vector<8x128xf32>
    %263 = arith.addf %260, %262 : vector<8x128xf32>
    %264 = math.tanh %263 : vector<8x128xf32>
    %265 = vector.extract_strided_slice %264 {offsets = [0, 0], sizes = [8, 96], strides = [1, 1]} : vector<8x128xf32> to vector<8x96xf32>
    %cst_60 = arith.constant 5.000000e-01 : f32
    %266 = vector.broadcast %cst_60 : f32 to vector<8x96xf32>
    %267 = arith.mulf %266, %265 : vector<8x96xf32>
    %cst_61 = arith.constant 5.000000e-01 : f32
    %268 = vector.broadcast %cst_61 : f32 to vector<8x96xf32>
    %269 = arith.addf %267, %268 : vector<8x96xf32>
    %270 = vector.extract_strided_slice %269 {offsets = [0, 0], sizes = [8, 32], strides = [1, 1]} : vector<8x96xf32> to vector<8x32xf32>
    %271 = vector.extract_strided_slice %269 {offsets = [0, 32], sizes = [8, 32], strides = [1, 1]} : vector<8x96xf32> to vector<8x32xf32>
    %272 = vector.extract_strided_slice %269 {offsets = [0, 64], sizes = [8, 32], strides = [1, 1]} : vector<8x96xf32> to vector<8x32xf32>
    %273 = vector.extract_strided_slice %264 {offsets = [0, 96], sizes = [8, 32], strides = [1, 1]} : vector<8x128xf32> to vector<8x32xf32>
    %274 = arith.mulf %271, %235 : vector<8x32xf32>
    %275 = arith.mulf %270, %273 : vector<8x32xf32>
    %276 = arith.addf %274, %275 : vector<8x32xf32>
    %277 = math.tanh %276 : vector<8x32xf32>
    %278 = arith.mulf %272, %277 : vector<8x32xf32>
    %279 = arith.truncf %278 : vector<8x32xf32> to vector<8x32xbf16>
    %cst_62 = arith.constant dense<0.000000e+00> : vector<8x128xf32>
    %280 = tpu.matmul %279, %1, %cst_62 {dimension_numbers = #tpu.dot_dimension_numbers<[1], [0], [0], [1], [0, 0, 1, 1], [], []>} : vector<8x32xbf16>, vector<32x128xbf16>, vector<8x128xf32> -> vector<8x128xf32>
    %281 = vector.broadcast %5 : vector<1x128xf32> to vector<8x128xf32>
    %282 = arith.addf %280, %281 : vector<8x128xf32>
    %283 = arith.truncf %259 : vector<8x32xf32> to vector<8x32xbf16>
    %cst_63 = arith.constant dense<0.000000e+00> : vector<8x128xf32>
    %284 = tpu.matmul %283, %3, %cst_63 {dimension_numbers = #tpu.dot_dimension_numbers<[1], [0], [0], [1], [0, 0, 1, 1], [], []>} : vector<8x32xbf16>, vector<32x128xbf16>, vector<8x128xf32> -> vector<8x128xf32>
    %285 = arith.addf %282, %284 : vector<8x128xf32>
    %286 = math.tanh %285 : vector<8x128xf32>
    %287 = vector.extract_strided_slice %286 {offsets = [0, 0], sizes = [8, 96], strides = [1, 1]} : vector<8x128xf32> to vector<8x96xf32>
    %cst_64 = arith.constant 5.000000e-01 : f32
    %288 = vector.broadcast %cst_64 : f32 to vector<8x96xf32>
    %289 = arith.mulf %288, %287 : vector<8x96xf32>
    %cst_65 = arith.constant 5.000000e-01 : f32
    %290 = vector.broadcast %cst_65 : f32 to vector<8x96xf32>
    %291 = arith.addf %289, %290 : vector<8x96xf32>
    %292 = vector.extract_strided_slice %291 {offsets = [0, 0], sizes = [8, 32], strides = [1, 1]} : vector<8x96xf32> to vector<8x32xf32>
    %293 = vector.extract_strided_slice %291 {offsets = [0, 32], sizes = [8, 32], strides = [1, 1]} : vector<8x96xf32> to vector<8x32xf32>
    %294 = vector.extract_strided_slice %291 {offsets = [0, 64], sizes = [8, 32], strides = [1, 1]} : vector<8x96xf32> to vector<8x32xf32>
    %295 = vector.extract_strided_slice %286 {offsets = [0, 96], sizes = [8, 32], strides = [1, 1]} : vector<8x128xf32> to vector<8x32xf32>
    %296 = arith.mulf %293, %257 : vector<8x32xf32>
    %297 = arith.mulf %292, %295 : vector<8x32xf32>
    %298 = arith.addf %296, %297 : vector<8x32xf32>
    %299 = math.tanh %298 : vector<8x32xf32>
    %300 = arith.mulf %294, %299 : vector<8x32xf32>
    %301 = vector.extract_strided_slice %9 {offsets = [56, 0], sizes = [8, 128], strides = [1, 1]} : vector<64x128xf32> to vector<8x128xf32>
    %302 = arith.truncf %278 : vector<8x32xf32> to vector<8x32xbf16>
    %cst_66 = arith.constant dense<0.000000e+00> : vector<8x128xf32>
    %303 = tpu.matmul %302, %2, %cst_66 {dimension_numbers = #tpu.dot_dimension_numbers<[1], [0], [0], [1], [0, 0, 1, 1], [], []>} : vector<8x32xbf16>, vector<32x128xbf16>, vector<8x128xf32> -> vector<8x128xf32>
    %304 = arith.addf %301, %303 : vector<8x128xf32>
    %305 = math.tanh %304 : vector<8x128xf32>
    %306 = vector.extract_strided_slice %305 {offsets = [0, 0], sizes = [8, 96], strides = [1, 1]} : vector<8x128xf32> to vector<8x96xf32>
    %cst_67 = arith.constant 5.000000e-01 : f32
    %307 = vector.broadcast %cst_67 : f32 to vector<8x96xf32>
    %308 = arith.mulf %307, %306 : vector<8x96xf32>
    %cst_68 = arith.constant 5.000000e-01 : f32
    %309 = vector.broadcast %cst_68 : f32 to vector<8x96xf32>
    %310 = arith.addf %308, %309 : vector<8x96xf32>
    %311 = vector.extract_strided_slice %310 {offsets = [0, 0], sizes = [8, 32], strides = [1, 1]} : vector<8x96xf32> to vector<8x32xf32>
    %312 = vector.extract_strided_slice %310 {offsets = [0, 32], sizes = [8, 32], strides = [1, 1]} : vector<8x96xf32> to vector<8x32xf32>
    %313 = vector.extract_strided_slice %310 {offsets = [0, 64], sizes = [8, 32], strides = [1, 1]} : vector<8x96xf32> to vector<8x32xf32>
    %314 = vector.extract_strided_slice %305 {offsets = [0, 96], sizes = [8, 32], strides = [1, 1]} : vector<8x128xf32> to vector<8x32xf32>
    %315 = arith.mulf %312, %276 : vector<8x32xf32>
    %316 = arith.mulf %311, %314 : vector<8x32xf32>
    %317 = arith.addf %315, %316 : vector<8x32xf32>
    %318 = math.tanh %317 : vector<8x32xf32>
    %319 = arith.mulf %313, %318 : vector<8x32xf32>
    %320 = arith.truncf %319 : vector<8x32xf32> to vector<8x32xbf16>
    %cst_69 = arith.constant dense<0.000000e+00> : vector<8x128xf32>
    %321 = tpu.matmul %320, %1, %cst_69 {dimension_numbers = #tpu.dot_dimension_numbers<[1], [0], [0], [1], [0, 0, 1, 1], [], []>} : vector<8x32xbf16>, vector<32x128xbf16>, vector<8x128xf32> -> vector<8x128xf32>
    %322 = vector.broadcast %5 : vector<1x128xf32> to vector<8x128xf32>
    %323 = arith.addf %321, %322 : vector<8x128xf32>
    %324 = arith.truncf %300 : vector<8x32xf32> to vector<8x32xbf16>
    %cst_70 = arith.constant dense<0.000000e+00> : vector<8x128xf32>
    %325 = tpu.matmul %324, %3, %cst_70 {dimension_numbers = #tpu.dot_dimension_numbers<[1], [0], [0], [1], [0, 0, 1, 1], [], []>} : vector<8x32xbf16>, vector<32x128xbf16>, vector<8x128xf32> -> vector<8x128xf32>
    %326 = arith.addf %323, %325 : vector<8x128xf32>
    %327 = math.tanh %326 : vector<8x128xf32>
    %328 = vector.extract_strided_slice %327 {offsets = [0, 0], sizes = [8, 96], strides = [1, 1]} : vector<8x128xf32> to vector<8x96xf32>
    %cst_71 = arith.constant 5.000000e-01 : f32
    %329 = vector.broadcast %cst_71 : f32 to vector<8x96xf32>
    %330 = arith.mulf %329, %328 : vector<8x96xf32>
    %cst_72 = arith.constant 5.000000e-01 : f32
    %331 = vector.broadcast %cst_72 : f32 to vector<8x96xf32>
    %332 = arith.addf %330, %331 : vector<8x96xf32>
    %333 = vector.extract_strided_slice %332 {offsets = [0, 0], sizes = [8, 32], strides = [1, 1]} : vector<8x96xf32> to vector<8x32xf32>
    %334 = vector.extract_strided_slice %332 {offsets = [0, 32], sizes = [8, 32], strides = [1, 1]} : vector<8x96xf32> to vector<8x32xf32>
    %335 = vector.extract_strided_slice %332 {offsets = [0, 64], sizes = [8, 32], strides = [1, 1]} : vector<8x96xf32> to vector<8x32xf32>
    %336 = vector.extract_strided_slice %327 {offsets = [0, 96], sizes = [8, 32], strides = [1, 1]} : vector<8x128xf32> to vector<8x32xf32>
    %337 = arith.mulf %334, %298 : vector<8x32xf32>
    %338 = arith.mulf %333, %336 : vector<8x32xf32>
    %339 = arith.addf %337, %338 : vector<8x32xf32>
    %340 = math.tanh %339 : vector<8x32xf32>
    %341 = arith.mulf %335, %340 : vector<8x32xf32>
    %342 = arith.truncf %341 : vector<8x32xf32> to vector<8x32xbf16>
    %c0_73 = arith.constant 0 : index
    %c0_74 = arith.constant 0 : index
    %343 = vector.load %arg8[%c0_73, %c0_74] : memref<32x128xbf16, #tpu.memory_space<vmem>>, vector<32x128xbf16>
    %cst_75 = arith.constant dense<0.000000e+00> : vector<8x128xf32>
    %344 = tpu.matmul %342, %343, %cst_75 {dimension_numbers = #tpu.dot_dimension_numbers<[1], [0], [0], [1], [0, 0, 1, 1], [], []>} : vector<8x32xbf16>, vector<32x128xbf16>, vector<8x128xf32> -> vector<8x128xf32>
    %c0_76 = arith.constant 0 : index
    %c0_77 = arith.constant 0 : index
    %345 = vector.load %arg9[%c0_76, %c0_77] : memref<1x128xf32, #tpu.memory_space<vmem>>, vector<1x128xf32>
    %346 = vector.broadcast %345 : vector<1x128xf32> to vector<8x128xf32>
    %347 = arith.addf %344, %346 : vector<8x128xf32>
    %c0_78 = arith.constant 0 : index
    %c0_79 = arith.constant 0 : index
    %348 = vector.load %arg10[%c0_78, %c0_79] : memref<8x128xf32, #tpu.memory_space<vmem>>, vector<8x128xf32>
    tpu.vector_store %arg10[%c0_78, %c0_79], %347 {strides = array<i32>} : memref<8x128xf32, #tpu.memory_space<vmem>>, vector<8x128xf32>,
    return
  }
  func.func @transform_0(%arg0: i32) -> (i32, i32) {
    %c0_i32 = arith.constant 0 : i32
    %c0_i32_0 = arith.constant 0 : i32
    %c0_i32_1 = arith.constant 0 : i32
    return %c0_i32, %c0_i32_0 : i32, i32
  }
  func.func @transform_1(%arg0: i32) -> (i32, i32) {
    %c0_i32 = arith.constant 0 : i32
    %c0_i32_0 = arith.constant 0 : i32
    %c0_i32_1 = arith.constant 0 : i32
    return %c0_i32, %c0_i32_0 : i32, i32
  }
  func.func @transform_2(%arg0: i32) -> (i32, i32) {
    %c0_i32 = arith.constant 0 : i32
    %c0_i32_0 = arith.constant 0 : i32
    %c0_i32_1 = arith.constant 0 : i32
    return %c0_i32, %c0_i32_0 : i32, i32
  }
  func.func @transform_3(%arg0: i32) -> (i32, i32) {
    %c0_i32 = arith.constant 0 : i32
    %c0_i32_0 = arith.constant 0 : i32
    %c0_i32_1 = arith.constant 0 : i32
    return %c0_i32, %c0_i32_0 : i32, i32
  }
  func.func @transform_4(%arg0: i32) -> (i32, i32) {
    %c0_i32 = arith.constant 0 : i32
    %c0_i32_0 = arith.constant 0 : i32
    %c0_i32_1 = arith.constant 0 : i32
    return %c0_i32, %c0_i32_0 : i32, i32
  }
  func.func @transform_5(%arg0: i32) -> (i32, i32) {
    %c0_i32 = arith.constant 0 : i32
    %c0_i32_0 = arith.constant 0 : i32
    %c0_i32_1 = arith.constant 0 : i32
    return %c0_i32, %c0_i32_0 : i32, i32
  }
  func.func @transform_6(%arg0: i32) -> (i32, i32) {
    %c0_i32 = arith.constant 0 : i32
    %c0_i32_0 = arith.constant 0 : i32
    %c0_i32_1 = arith.constant 0 : i32
    return %c0_i32, %c0_i32_0 : i32, i32
  }
  func.func @transform_7(%arg0: i32) -> (i32, i32) {
    %c0_i32 = arith.constant 0 : i32
    %c0_i32_0 = arith.constant 0 : i32
    %c0_i32_1 = arith.constant 0 : i32
    return %c0_i32, %c0_i32_0 : i32, i32
  }
  func.func @transform_8(%arg0: i32) -> (i32, i32) {
    %c0_i32 = arith.constant 0 : i32
    %c0_i32_0 = arith.constant 0 : i32
    %c0_i32_1 = arith.constant 0 : i32
    return %c0_i32, %c0_i32_0 : i32, i32
  }
  func.func @transform_9(%arg0: i32) -> (i32, i32) {
    %c0_i32 = arith.constant 0 : i32
    %c0_i32_0 = arith.constant 0 : i32
    %c0_i32_1 = arith.constant 0 : i32
    return %c0_i32, %c0_i32_0 : i32, i32
  }
}

</mosaic_0001>

<llo_original>
// kernel: tpu_custom_call.1
$region0: #{tpu_custom_call.1}
  #allocation0 [shape = 'u32[]', space=smem, size = 0x4, offset = 0x4, fixed_abs, tag = 'smem constant byte address 0x4 - core index']
  #allocation1 [shape = 'u32[144,128]{1,0:T(1,128)}', space=vmem, size = 0x12000, scoped, tag = 'internal scratch']
  %s0 = inlined_call_operand.vmem [shape: bf16[64,16], index: 0, kind: input, shape index: {}]
  %s1 = inlined_call_operand.hbm [shape: bf16[16,128], index: 1, kind: input, shape index: {}]
  %s2 = inlined_call_operand.vmem [shape: bf16[32,128], index: 2, kind: input, shape index: {}]
  %s3 = inlined_call_operand.vmem [shape: f32[1,128], index: 3, kind: input, shape index: {}]
  %s4 = inlined_call_operand.vmem [shape: bf16[32,128], index: 4, kind: input, shape index: {}]
  %s5 = inlined_call_operand.vmem [shape: bf16[32,128], index: 5, kind: input, shape index: {}]
  %s6 = inlined_call_operand.vmem [shape: f32[1,128], index: 6, kind: input, shape index: {}]
  %s7 = inlined_call_operand.hbm [shape: bf16[32,128], index: 7, kind: input, shape index: {}]
  %s8 = inlined_call_operand.vmem [shape: f32[1,128], index: 8, kind: input, shape index: {}]
  %s9 = inlined_call_operand.hbm [shape: f32[8,128], index: 9, kind: output, shape index: {}]
  %s10 = sld [smem:[#allocation0]]
  $region54: #{tpu_custom_call.1} parent=0
    _
  %s12 = ssub.s32 1, %s10
  %s13 = scalar_select 0, %s12, %s10
  $region1: #{tpu_custom_call.1} parent=0
    #allocation2 [shape = 'u8[4096]{0}', space=vmem, size = 0x1000, scoped, tag = 'input window, operand 1, single buffered']
    #allocation3 [shape = 's32[1]{0}', space=sflag, size = 0x4, scoped, tag = 'scoped memory for tpu_custom_call.1']
    #allocation4 [shape = 's32[1]{0}', space=sflag, size = 0x4, scoped, tag = 'scoped memory for tpu_custom_call.1']
    #allocation5 [shape = 'u8[8192]{0}', space=vmem, size = 0x2000, scoped, tag = 'input window, operand 7, single buffered']
    #allocation6 [shape = 's32[1]{0}', space=sflag, size = 0x4, scoped, tag = 'scoped memory for tpu_custom_call.1']
    #allocation7 [shape = 'u8[4096]{0}', space=vmem, size = 0x1000, scoped, tag = 'output window, operand 0, single buffered']
    %14 = vsyncpa [#allocation3], 0
    %15 = vsyncpa [#allocation6], 0
    %16 = vsyncpa [#allocation4], 0
    // Predicated region
    $region2: #{tpu_custom_call.1} parent=1 // pred_check
      _
    $region3: #{tpu_custom_call.1} parent=1 // pred_check_branch
      %18 = sbr.rel (0) target = $region5
    $region4: #{tpu_custom_call.1} parent=1 // pred_region
      _
    $region5: #{tpu_custom_call.1} parent=1 // pred_fallthru
      _
    // Predicated region
    $region6: #{tpu_custom_call.1} parent=1 // pred_check
      _
    $region7: #{tpu_custom_call.1} parent=1 // pred_check_branch
      %20 = sbr.rel (0) target = $region9
    $region8: #{tpu_custom_call.1} parent=1 // pred_region
      %s22 = ssub.s32 128, 128
      %23 = vsyncadd [#allocation3], %s22
      %s24 = sshll.u32 [#allocation2], 4
      %s25 = int_to_ptr.vmem [resolvable:$true] %s24
      %30 = dma.hbm_to_vmem [thread:$0]  %s1, 128, %s25, [#allocation3], 64, 64, 4
    $region9: #{tpu_custom_call.1} parent=1 // pred_fallthru
      _
    // Predicated region
    $region10: #{tpu_custom_call.1} parent=1 // pred_check
      _
    $region11: #{tpu_custom_call.1} parent=1 // pred_check_branch
      %32 = sbr.rel (0) target = $region13
    $region12: #{tpu_custom_call.1} parent=1 // pred_region
      _
    $region13: #{tpu_custom_call.1} parent=1 // pred_fallthru
      _
    // Predicated region
    $region14: #{tpu_custom_call.1} parent=1 // pred_check
      _
    $region15: #{tpu_custom_call.1} parent=1 // pred_check_branch
      %34 = sbr.rel (0) target = $region17
    $region16: #{tpu_custom_call.1} parent=1 // pred_region
      _
    $region17: #{tpu_custom_call.1} parent=1 // pred_fallthru
      _
    // Predicated region
    $region18: #{tpu_custom_call.1} parent=1 // pred_check
      _
    $region19: #{tpu_custom_call.1} parent=1 // pred_check_branch
      %36 = sbr.rel (0) target = $region21
    $region20: #{tpu_custom_call.1} parent=1 // pred_region
      _
    $region21: #{tpu_custom_call.1} parent=1 // pred_fallthru
      _
    // Predicated region
    $region22: #{tpu_custom_call.1} parent=1 // pred_check
      _
    $region23: #{tpu_custom_call.1} parent=1 // pred_check_branch
      %38 = sbr.rel (0) target = $region25
    $region24: #{tpu_custom_call.1} parent=1 // pred_region
      _
    $region25: #{tpu_custom_call.1} parent=1 // pred_fallthru
      _
    // Predicated region
    $region26: #{tpu_custom_call.1} parent=1 // pred_check
      _
    $region27: #{tpu_custom_call.1} parent=1 // pred_check_branch
      %40 = sbr.rel (0) target = $region29
    $region28: #{tpu_custom_call.1} parent=1 // pred_region
      _
    $region29: #{tpu_custom_call.1} parent=1 // pred_fallthru
      _
    // Predicated region
    $region30: #{tpu_custom_call.1} parent=1 // pred_check
      _
    $region31: #{tpu_custom_call.1} parent=1 // pred_check_branch
      %42 = sbr.rel (0) target = $region33
    $region32: #{tpu_custom_call.1} parent=1 // pred_region
      %s44 = ssub.s32 256, 256
      %45 = vsyncadd [#allocation6], %s44
      %s46 = sshll.u32 [#allocation5], 4
      %s47 = int_to_ptr.vmem [resolvable:$true] %s46
      %52 = dma.hbm_to_vmem [thread:$0]  %s7, 256, %s47, [#allocation6], 64, 64, 4
    $region33: #{tpu_custom_call.1} parent=1 // pred_fallthru
      _
    // Predicated region
    $region34: #{tpu_custom_call.1} parent=1 // pred_check
      _
    $region35: #{tpu_custom_call.1} parent=1 // pred_check_branch
      %54 = sbr.rel (0) target = $region37
    $region36: #{tpu_custom_call.1} parent=1 // pred_region
      _
    $region37: #{tpu_custom_call.1} parent=1 // pred_fallthru
      _
    // Predicated region
    $region38: #{tpu_custom_call.1} parent=1 // pred_check
      _
    $region39: #{tpu_custom_call.1} parent=1 // pred_check_branch
      %56 = sbr.rel (0) target = $region41
    $region40: #{tpu_custom_call.1} parent=1 // pred_region
      %57 = dma.done [#allocation3], 128
    $region41: #{tpu_custom_call.1} parent=1 // pred_fallthru
      _
    // Predicated region
    $region42: #{tpu_custom_call.1} parent=1 // pred_check
      _
    $region43: #{tpu_custom_call.1} parent=1 // pred_check_branch
      %59 = sbr.rel (0) target = $region45
    $region44: #{tpu_custom_call.1} parent=1 // pred_region
      %60 = dma.done [#allocation6], 256
    $region45: #{tpu_custom_call.1} parent=1 // pred_fallthru
      _
    %v62 = vld [vmem:[#allocation2] sm:$0xf]
    %v63 = vld [vmem:[#allocation2 + $0x4] sm:$0xf]
    %v64 = vld [vmem:[%s4] sm:$0xf]
    %v65 = vld [vmem:[%s4 + $0x4] sm:$0xf]
    %v66 = vld [vmem:[%s4 + $0x8] sm:$0xf]
    %v67 = vld [vmem:[%s4 + $0xc] sm:$0xf]
    %v68 = vld [vmem:[%s2] sm:$0xf]
    %v69 = vld [vmem:[%s2 + $0x4] sm:$0xf]
    %v70 = vld [vmem:[%s2 + $0x8] sm:$0xf]
    %v71 = vld [vmem:[%s2 + $0xc] sm:$0xf]
    %v72 = vld [vmem:[%s5] sm:$0xf]
    %v73 = vld [vmem:[%s5 + $0x4] sm:$0xf]
    %v74 = vld [vmem:[%s5 + $0x8] sm:$0xf]
    %v75 = vld [vmem:[%s5 + $0xc] sm:$0xf]
    %v76 = vld [vmem:[%s3] sm:$0x1]
    %v77 = vld [vmem:[%s6] sm:$0x1]
    %v78 = vld [vmem:[%s0] sm:$0xf]
    %v79 = vld [vmem:[%s0 + $0x4] sm:$0xf]
    %v80 = vld [vmem:[%s0 + $0x8] sm:$0xf]
    %v81 = vld [vmem:[%s0 + $0xc] sm:$0xf]
    %v82 = vld [vmem:[%s0 + $0x10] sm:$0xf]
    %v83 = vld [vmem:[%s0 + $0x14] sm:$0xf]
    %v84 = vld [vmem:[%s0 + $0x18] sm:$0xf]
    %v85 = vld [vmem:[%s0 + $0x1c] sm:$0xf]
    %v87 = vlaneseq
    %v88 = vshrl.u32 %v87, 7
    %v89 = vsub.s32 0, %v88
    %v90 = vrot.slane %v76, %v89
    %v100 = vunpack.c.l.b16 %v78
    %v101 = vunpack.c.l.b16 %v79
    %v102 = vunpack.c.l.b16 %v80
    %v103 = vunpack.c.l.b16 %v81
    %v104 = vunpack.c.l.b16 %v82
    %v105 = vunpack.c.l.b16 %v83
    %v106 = vunpack.c.l.b16 %v84
    %v107 = vunpack.c.l.b16 %v85
    %v108 = vpack.c.b16 %v101, %v100
    %v109 = vpack.c.b16 %v103, %v102
    %v110 = vpack.c.b16 %v105, %v104
    %v111 = vpack.c.b16 %v107, %v106
    %v114 = vunpack.c.l.b16 %v62
    %v115 = vunpack.c.l.b16 %v63
    %v116 = vpack.c.b16 %v115, %v114
    %vm118 = vcmask 130048
    %v120 = vsel %vm118, %v108, 0
    %v123 = vsel %vm118, %v109, 0
    %v126 = vsel %vm118, %v110, 0
    %v129 = vsel %vm118, %v111, 0
    %131 = vmatprep.subr.bf16.mxu0 0
    %132 = vmatpush1.bf16.msra.mxu0 0
    %133 = vmatprep.subr.bf16.mxu0 0
    %134 = vmatpush1.bf16.msra.mxu0 0
    %135 = vmatprep.subr.bf16.mxu0 0
    %136 = vmatpush1.bf16.msra.mxu0 0
    %137 = vmatprep.subr.bf16.mxu0 0
    %138 = vmatpush1.bf16.msra.mxu0 0
    %139 = vmatprep.subr.bf16.mxu0 0
    %140 = vmatpush1.bf16.msra.mxu0 0
    %141 = vmatprep.subr.bf16.mxu0 0
    %142 = vmatpush1.bf16.msra.mxu0 0
    %143 = vmatprep.subr.bf16.mxu0 0
    %144 = vmatpush1.bf16.msra.mxu0 0
    %145 = vmatprep.subr.bf16.mxu0 0
    %146 = vmatpush1.bf16.msra.mxu0 %v116
    %147 = vmatprep.subr.bf16.mxu0 0
    %148 = vmatpush2.bf16.msra.mxu0 0
    %149 = vmatprep.subr.bf16.mxu0 0
    %150 = vmatpush2.bf16.msra.mxu0 0
    %151 = vmatprep.subr.bf16.mxu0 0
    %152 = vmatpush2.bf16.msra.mxu0 0
    %153 = vmatprep.subr.bf16.mxu0 0
    %154 = vmatpush2.bf16.msra.mxu0 0
    %155 = vmatprep.subr.bf16.mxu0 0
    %156 = vmatpush2.bf16.msra.mxu0 0
    %157 = vmatprep.subr.bf16.mxu0 0
    %158 = vmatpush2.bf16.msra.mxu0 0
    %159 = vmatprep.subr.bf16.mxu0 0
    %160 = vmatpush2.bf16.msra.mxu0 0
    %161 = vmatprep.subr.bf16.mxu0 0
    %162 = vmatpush2.bf16.msra.mxu0 0
    %163 = vmatprep.mubr.bf16.mxu0 0
    %164 = vmatmul.mubr.bf16.gmra.mxu0 %v120
    %v165 = vpop.f32.mrf.mxu0
    %v166 = vadd.f32 %v90, %v165
    %v167 = vpop.f32.mrf.mxu0
    %v168 = vpop.f32.mrf.mxu0
    %v169 = vadd.f32 %v90, %v168
    %v170 = vpop.f32.mrf.mxu0
    %171 = vmatprep.mubr.bf16.mxu0 0
    %172 = vmatmul.mubr.bf16.gmra.mxu0 %v123
    %v173 = vpop.f32.mrf.mxu0
    %v174 = vadd.f32 %v90, %v173
    %v175 = vpop.f32.mrf.mxu0
    %v176 = vpop.f32.mrf.mxu0
    %v177 = vadd.f32 %v90, %v176
    %v178 = vpop.f32.mrf.mxu0
    %179 = vmatprep.mubr.bf16.mxu0 0
    %180 = vmatmul.mubr.bf16.gmra.mxu0 %v126
    %v181 = vpop.f32.mrf.mxu0
    %v182 = vadd.f32 %v90, %v181
    %v183 = vpop.f32.mrf.mxu0
    %v184 = vpop.f32.mrf.mxu0
    %v185 = vadd.f32 %v90, %v184
    %v186 = vpop.f32.mrf.mxu0
    %187 = vmatprep.mubr.bf16.mxu0 0
    %188 = vmatmul.mubr.bf16.gmra.mxu0 %v129
    %v189 = vpop.f32.mrf.mxu0
    %v190 = vadd.f32 %v90, %v189
    %v191 = vpop.f32.mrf.mxu0
    %v192 = vpop.f32.mrf.mxu0
    %v193 = vadd.f32 %v90, %v192
    %v194 = vpop.f32.mrf.mxu0
    %195 = vdwg.mxu0
    %v200 = vunpack.c.l.b16 %v68
    %v201 = vunpack.c.l.b16 %v69
    %v202 = vunpack.c.l.b16 %v70
    %v203 = vunpack.c.l.b16 %v71
    %v204 = vpack.c.b16 %v201, %v200
    %v205 = vpack.c.b16 %v203, %v202
    %vm208 = vcmask 261120
    %v210 = vsel %vm208, 0, 0
    %212 = vmatprep.subr.bf16.mxu0 0
    %213 = vmatpush1.bf16.msra.mxu0 0
    %214 = vmatprep.subr.bf16.mxu0 0
    %215 = vmatpush1.bf16.msra.mxu0 0
    %216 = vmatprep.subr.bf16.mxu0 0
    %217 = vmatpush1.bf16.msra.mxu0 0
    %218 = vmatprep.subr.bf16.mxu0 0
    %219 = vmatpush1.bf16.msra.mxu0 0
    %220 = vmatprep.subr.bf16.mxu0 0
    %221 = vmatpush1.bf16.msra.mxu0 0
    %222 = vmatprep.subr.bf16.mxu0 0
    %223 = vmatpush1.bf16.msra.mxu0 0
    %224 = vmatprep.subr.bf16.mxu0 0
    %225 = vmatpush1.bf16.msra.mxu0 %v205
    %226 = vmatprep.subr.bf16.mxu0 0
    %227 = vmatpush1.bf16.msra.mxu0 %v204
    %228 = vmatprep.subr.bf16.mxu0 0
    %229 = vmatpush2.bf16.msra.mxu0 0
    %230 = vmatprep.subr.bf16.mxu0 0
    %231 = vmatpush2.bf16.msra.mxu0 0
    %232 = vmatprep.subr.bf16.mxu0 0
    %233 = vmatpush2.bf16.msra.mxu0 0
    %234 = vmatprep.subr.bf16.mxu0 0
    %235 = vmatpush2.bf16.msra.mxu0 0
    %236 = vmatprep.subr.bf16.mxu0 0
    %237 = vmatpush2.bf16.msra.mxu0 0
    %238 = vmatprep.subr.bf16.mxu0 0
    %239 = vmatpush2.bf16.msra.mxu0 0
    %240 = vmatprep.subr.bf16.mxu0 0
    %241 = vmatpush2.bf16.msra.mxu0 0
    %242 = vmatprep.subr.bf16.mxu0 0
    %243 = vmatpush2.bf16.msra.mxu0 0
    %244 = vmatprep.mubr.bf16.mxu0 0
    %245 = vmatmul.mubr.bf16.gmra.mxu0 %v210
    %v246 = vpop.f32.mrf.mxu0
    %v247 = vadd.f32 0.0, %v246
    %v248 = vpop.f32.mrf.mxu0
    %v249 = vpop.f32.mrf.mxu0
    %v250 = vpop.f32.mrf.mxu0
    %251 = vdwg.mxu0
    %v252 = vadd.f32 %v166, %v247
    %v253 = vtanh.pop %v252
    %v254 = vmul.f32 %v253, 0.5
    %v255 = vadd.f32 %v254, 0.5
    %v256 = vmul.f32 %v255, 0.0
    %258 = vrot.lane.b32.xlu0 %v253, 32
    %v259 = vpop.permute.xlu0 %258
    %v261 = vmul.f32 %v255, %v259
    %263 = vrot.lane.b32.xlu0 %v261, 32
    %v264 = vpop.permute.xlu0 %263
    %v266 = vadd.f32 %v256, %v264
    %v267 = vtanh.pop %v266
    %269 = vrot.lane.b32.xlu0 %v267, 32
    %v270 = vpop.permute.xlu0 %269
    %v272 = vmul.f32 %v255, %v270
    %v273 = vpack.c.bf16 %v272, %v272
    %v275 = vlaneseq
    %v276 = vshrl.u32 %v275, 7
    %v277 = vsub.s32 0, %v276
    %v278 = vrot.slane %v77, %v277
    %281 = vrot.lane.b32.xlu0 %v273, 64
    %v282 = vpop.permute.xlu0 %281
    %v287 = vunpack.c.l.b16 %v64
    %v288 = vunpack.c.l.b16 %v65
    %v289 = vunpack.c.l.b16 %v66
    %v290 = vunpack.c.l.b16 %v67
    %v291 = vpack.c.b16 %v288, %v287
    %v292 = vpack.c.b16 %v290, %v289
    %v296 = vsel %vm208, %v282, 0
    %298 = vmatprep.subr.bf16.mxu0 0
    %299 = vmatpush1.bf16.msra.mxu0 0
    %300 = vmatprep.subr.bf16.mxu0 0
    %301 = vmatpush1.bf16.msra.mxu0 0
    %302 = vmatprep.subr.bf16.mxu0 0
    %303 = vmatpush1.bf16.msra.mxu0 0
    %304 = vmatprep.subr.bf16.mxu0 0
    %305 = vmatpush1.bf16.msra.mxu0 0
    %306 = vmatprep.subr.bf16.mxu0 0
    %307 = vmatpush1.bf16.msra.mxu0 0
    %308 = vmatprep.subr.bf16.mxu0 0
    %309 = vmatpush1.bf16.msra.mxu0 0
    %310 = vmatprep.subr.bf16.mxu0 0
    %311 = vmatpush1.bf16.msra.mxu0 %v292
    %312 = vmatprep.subr.bf16.mxu0 0
    %313 = vmatpush1.bf16.msra.mxu0 %v291
    %314 = vmatprep.subr.bf16.mxu0 0
    %315 = vmatpush2.bf16.msra.mxu0 0
    %316 = vmatprep.subr.bf16.mxu0 0
    %317 = vmatpush2.bf16.msra.mxu0 0
    %318 = vmatprep.subr.bf16.mxu0 0
    %319 = vmatpush2.bf16.msra.mxu0 0
    %320 = vmatprep.subr.bf16.mxu0 0
    %321 = vmatpush2.bf16.msra.mxu0 0
    %322 = vmatprep.subr.bf16.mxu0 0
    %323 = vmatpush2.bf16.msra.mxu0 0
    %324 = vmatprep.subr.bf16.mxu0 0
    %325 = vmatpush2.bf16.msra.mxu0 0
    %326 = vmatprep.subr.bf16.mxu0 0
    %327 = vmatpush2.bf16.msra.mxu0 0
    %328 = vmatprep.subr.bf16.mxu0 0
    %329 = vmatpush2.bf16.msra.mxu0 0
    %330 = vmatprep.mubr.bf16.mxu0 0
    %331 = vmatmul.mubr.bf16.gmra.mxu0 %v296
    %v332 = vpop.f32.mrf.mxu0
    %v333 = vadd.f32 %v278, %v332
    %v334 = vpop.f32.mrf.mxu0
    %v335 = vpop.f32.mrf.mxu0
    %v336 = vpop.f32.mrf.mxu0
    %337 = vdwg.mxu0
    %v342 = vunpack.c.l.b16 %v72
    %v343 = vunpack.c.l.b16 %v73
    %v344 = vunpack.c.l.b16 %v74
    %v345 = vunpack.c.l.b16 %v75
    %v346 = vpack.c.b16 %v343, %v342
    %v347 = vpack.c.b16 %v345, %v344
    %350 = vmatprep.subr.bf16.mxu0 0
    %351 = vmatpush1.bf16.msra.mxu0 0
    %352 = vmatprep.subr.bf16.mxu0 0
    %353 = vmatpush1.bf16.msra.mxu0 0
    %354 = vmatprep.subr.bf16.mxu0 0
    %355 = vmatpush1.bf16.msra.mxu0 0
    %356 = vmatprep.subr.bf16.mxu0 0
    %357 = vmatpush1.bf16.msra.mxu0 0
    %358 = vmatprep.subr.bf16.mxu0 0
    %359 = vmatpush1.bf16.msra.mxu0 0
    %360 = vmatprep.subr.bf16.mxu0 0
    %361 = vmatpush1.bf16.msra.mxu0 0
    %362 = vmatprep.subr.bf16.mxu0 0
    %363 = vmatpush1.bf16.msra.mxu0 %v347
    %364 = vmatprep.subr.bf16.mxu0 0
    %365 = vmatpush1.bf16.msra.mxu0 %v346
    %366 = vmatprep.subr.bf16.mxu0 0
    %367 = vmatpush2.bf16.msra.mxu0 0
    %368 = vmatprep.subr.bf16.mxu0 0
    %369 = vmatpush2.bf16.msra.mxu0 0
    %370 = vmatprep.subr.bf16.mxu0 0
    %371 = vmatpush2.bf16.msra.mxu0 0
    %372 = vmatprep.subr.bf16.mxu0 0
    %373 = vmatpush2.bf16.msra.mxu0 0
    %374 = vmatprep.subr.bf16.mxu0 0
    %375 = vmatpush2.bf16.msra.mxu0 0
    %376 = vmatprep.subr.bf16.mxu0 0
    %377 = vmatpush2.bf16.msra.mxu0 0
    %378 = vmatprep.subr.bf16.mxu0 0
    %379 = vmatpush2.bf16.msra.mxu0 0
    %380 = vmatprep.subr.bf16.mxu0 0
    %381 = vmatpush2.bf16.msra.mxu0 0
    %382 = vmatprep.mubr.bf16.mxu0 0
    %383 = vmatmul.mubr.bf16.gmra.mxu0 %v210
    %v384 = vpop.f32.mrf.mxu0
    %v385 = vadd.f32 0.0, %v384
    %v386 = vpop.f32.mrf.mxu0
    %v387 = vpop.f32.mrf.mxu0
    %v388 = vpop.f32.mrf.mxu0
    %389 = vdwg.mxu0
    %v390 = vadd.f32 %v333, %v385
    %v391 = vtanh.pop %v390
    %v392 = vmul.f32 %v391, 0.5
    %v393 = vadd.f32 %v392, 0.5
    %v394 = vmul.f32 %v393, 0.0
    %396 = vrot.lane.b32.xlu0 %v391, 32
    %v397 = vpop.permute.xlu0 %396
    %v399 = vmul.f32 %v393, %v397
    %401 = vrot.lane.b32.xlu0 %v399, 32
    %v402 = vpop.permute.xlu0 %401
    %v404 = vadd.f32 %v394, %v402
    %v405 = vtanh.pop %v404
    %407 = vrot.lane.b32.xlu0 %v405, 32
    %v408 = vpop.permute.xlu0 %407
    %v410 = vmul.f32 %v393, %v408
    %411 = vmatprep.subr.bf16.mxu0 0
    %412 = vmatpush1.bf16.msra.mxu0 0
    %413 = vmatprep.subr.bf16.mxu0 0
    %414 = vmatpush1.bf16.msra.mxu0 0
    %415 = vmatprep.subr.bf16.mxu0 0
    %416 = vmatpush1.bf16.msra.mxu0 0
    %417 = vmatprep.subr.bf16.mxu0 0
    %418 = vmatpush1.bf16.msra.mxu0 0
    %419 = vmatprep.subr.bf16.mxu0 0
    %420 = vmatpush1.bf16.msra.mxu0 0
    %421 = vmatprep.subr.bf16.mxu0 0
    %422 = vmatpush1.bf16.msra.mxu0 0
    %423 = vmatprep.subr.bf16.mxu0 0
    %424 = vmatpush1.bf16.msra.mxu0 %v205
    %425 = vmatprep.subr.bf16.mxu0 0
    %426 = vmatpush1.bf16.msra.mxu0 %v204
    %427 = vmatprep.subr.bf16.mxu0 0
    %428 = vmatpush2.bf16.msra.mxu0 0
    %429 = vmatprep.subr.bf16.mxu0 0
    %430 = vmatpush2.bf16.msra.mxu0 0
    %431 = vmatprep.subr.bf16.mxu0 0
    %432 = vmatpush2.bf16.msra.mxu0 0
    %433 = vmatprep.subr.bf16.mxu0 0
    %434 = vmatpush2.bf16.msra.mxu0 0
    %435 = vmatprep.subr.bf16.mxu0 0
    %436 = vmatpush2.bf16.msra.mxu0 0
    %437 = vmatprep.subr.bf16.mxu0 0
    %438 = vmatpush2.bf16.msra.mxu0 0
    %439 = vmatprep.subr.bf16.mxu0 0
    %440 = vmatpush2.bf16.msra.mxu0 0
    %441 = vmatprep.subr.bf16.mxu0 0
    %442 = vmatpush2.bf16.msra.mxu0 0
    %443 = vmatprep.mubr.bf16.mxu0 0
    %444 = vmatmul.mubr.bf16.gmra.mxu0 %v296
    %v445 = vpop.f32.mrf.mxu0
    %v446 = vadd.f32 0.0, %v445
    %v447 = vpop.f32.mrf.mxu0
    %v448 = vpop.f32.mrf.mxu0
    %v449 = vpop.f32.mrf.mxu0
    %450 = vdwg.mxu0
    %v451 = vadd.f32 %v169, %v446
    %v452 = vtanh.pop %v451
    %v453 = vmul.f32 %v452, 0.5
    %v454 = vadd.f32 %v453, 0.5
    %v455 = vmul.f32 %v454, %v266
    %457 = vrot.lane.b32.xlu0 %v452, 32
    %v458 = vpop.permute.xlu0 %457
    %v460 = vmul.f32 %v454, %v458
    %462 = vrot.lane.b32.xlu0 %v460, 32
    %v463 = vpop.permute.xlu0 %462
    %v465 = vadd.f32 %v455, %v463
    %v466 = vtanh.pop %v465
    %468 = vrot.lane.b32.xlu0 %v466, 32
    %v469 = vpop.permute.xlu0 %468
    %v471 = vmul.f32 %v454, %v469
    %v472 = vpack.c.bf16 %v471, %v471
    %474 = vrot.lane.b32.xlu0 %v472, 64
    %v475 = vpop.permute.xlu0 %474
    %v477 = vsel %vm208, %v475, 0
    %479 = vmatprep.subr.bf16.mxu0 0
    %480 = vmatpush1.bf16.msra.mxu0 0
    %481 = vmatprep.subr.bf16.mxu0 0
    %482 = vmatpush1.bf16.msra.mxu0 0
    %483 = vmatprep.subr.bf16.mxu0 0
    %484 = vmatpush1.bf16.msra.mxu0 0
    %485 = vmatprep.subr.bf16.mxu0 0
    %486 = vmatpush1.bf16.msra.mxu0 0
    %487 = vmatprep.subr.bf16.mxu0 0
    %488 = vmatpush1.bf16.msra.mxu0 0
    %489 = vmatprep.subr.bf16.mxu0 0
    %490 = vmatpush1.bf16.msra.mxu0 0
    %491 = vmatprep.subr.bf16.mxu0 0
    %492 = vmatpush1.bf16.msra.mxu0 %v292
    %493 = vmatprep.subr.bf16.mxu0 0
    %494 = vmatpush1.bf16.msra.mxu0 %v291
    %495 = vmatprep.subr.bf16.mxu0 0
    %496 = vmatpush2.bf16.msra.mxu0 0
    %497 = vmatprep.subr.bf16.mxu0 0
    %498 = vmatpush2.bf16.msra.mxu0 0
    %499 = vmatprep.subr.bf16.mxu0 0
    %500 = vmatpush2.bf16.msra.mxu0 0
    %501 = vmatprep.subr.bf16.mxu0 0
    %502 = vmatpush2.bf16.msra.mxu0 0
    %503 = vmatprep.subr.bf16.mxu0 0
    %504 = vmatpush2.bf16.msra.mxu0 0
    %505 = vmatprep.subr.bf16.mxu0 0
    %506 = vmatpush2.bf16.msra.mxu0 0
    %507 = vmatprep.subr.bf16.mxu0 0
    %508 = vmatpush2.bf16.msra.mxu0 0
    %509 = vmatprep.subr.bf16.mxu0 0
    %510 = vmatpush2.bf16.msra.mxu0 0
    %511 = vmatprep.mubr.bf16.mxu0 0
    %512 = vmatmul.mubr.bf16.gmra.mxu0 %v477
    %v513 = vpop.f32.mrf.mxu0
    %v514 = vadd.f32 %v278, %v513
    %v515 = vpop.f32.mrf.mxu0
    %v516 = vpop.f32.mrf.mxu0
    %v517 = vpop.f32.mrf.mxu0
    %518 = vdwg.mxu0
    %v519 = vpack.c.bf16 %v410, %v410
    %521 = vrot.lane.b32.xlu0 %v519, 64
    %v522 = vpop.permute.xlu0 %521
    %v524 = vsel %vm208, %v522, 0
    %526 = vmatprep.subr.bf16.mxu0 0
    %527 = vmatpush1.bf16.msra.mxu0 0
    %528 = vmatprep.subr.bf16.mxu0 0
    %529 = vmatpush1.bf16.msra.mxu0 0
    %530 = vmatprep.subr.bf16.mxu0 0
    %531 = vmatpush1.bf16.msra.mxu0 0
    %532 = vmatprep.subr.bf16.mxu0 0
    %533 = vmatpush1.bf16.msra.mxu0 0
    %534 = vmatprep.subr.bf16.mxu0 0
    %535 = vmatpush1.bf16.msra.mxu0 0
    %536 = vmatprep.subr.bf16.mxu0 0
    %537 = vmatpush1.bf16.msra.mxu0 0
    %538 = vmatprep.subr.bf16.mxu0 0
    %539 = vmatpush1.bf16.msra.mxu0 %v347
    %540 = vmatprep.subr.bf16.mxu0 0
    %541 = vmatpush1.bf16.msra.mxu0 %v346
    %542 = vmatprep.subr.bf16.mxu0 0
    %543 = vmatpush2.bf16.msra.mxu0 0
    %544 = vmatprep.subr.bf16.mxu0 0
    %545 = vmatpush2.bf16.msra.mxu0 0
    %546 = vmatprep.subr.bf16.mxu0 0
    %547 = vmatpush2.bf16.msra.mxu0 0
    %548 = vmatprep.subr.bf16.mxu0 0
    %549 = vmatpush2.bf16.msra.mxu0 0
    %550 = vmatprep.subr.bf16.mxu0 0
    %551 = vmatpush2.bf16.msra.mxu0 0
    %552 = vmatprep.subr.bf16.mxu0 0
    %553 = vmatpush2.bf16.msra.mxu0 0
    %554 = vmatprep.subr.bf16.mxu0 0
    %555 = vmatpush2.bf16.msra.mxu0 0
    %556 = vmatprep.subr.bf16.mxu0 0
    %557 = vmatpush2.bf16.msra.mxu0 0
    %558 = vmatprep.mubr.bf16.mxu0 0
    %559 = vmatmul.mubr.bf16.gmra.mxu0 %v524
    %v560 = vpop.f32.mrf.mxu0
    %v561 = vadd.f32 0.0, %v560
    %v562 = vpop.f32.mrf.mxu0
    %v563 = vpop.f32.mrf.mxu0
    %v564 = vpop.f32.mrf.mxu0
    %565 = vdwg.mxu0
    %v566 = vadd.f32 %v514, %v561
    %v567 = vtanh.pop %v566
    %v568 = vmul.f32 %v567, 0.5
    %v569 = vadd.f32 %v568, 0.5
    %v570 = vmul.f32 %v569, %v404
    %572 = vrot.lane.b32.xlu0 %v567, 32
    %v573 = vpop.permute.xlu0 %572
    %v575 = vmul.f32 %v569, %v573
    %577 = vrot.lane.b32.xlu0 %v575, 32
    %v578 = vpop.permute.xlu0 %577
    %v580 = vadd.f32 %v570, %v578
    %v581 = vtanh.pop %v580
    %583 = vrot.lane.b32.xlu0 %v581, 32
    %v584 = vpop.permute.xlu0 %583
    %v586 = vmul.f32 %v569, %v584
    %587 = vmatprep.subr.bf16.mxu0 0
    %588 = vmatpush1.bf16.msra.mxu0 0
    %589 = vmatprep.subr.bf16.mxu0 0
    %590 = vmatpush1.bf16.msra.mxu0 0
    %591 = vmatprep.subr.bf16.mxu0 0
    %592 = vmatpush1.bf16.msra.mxu0 0
    %593 = vmatprep.subr.bf16.mxu0 0
    %594 = vmatpush1.bf16.msra.mxu0 0
    %595 = vmatprep.subr.bf16.mxu0 0
    %596 = vmatpush1.bf16.msra.mxu0 0
    %597 = vmatprep.subr.bf16.mxu0 0
    %598 = vmatpush1.bf16.msra.mxu0 0
    %599 = vmatprep.subr.bf16.mxu0 0
    %600 = vmatpush1.bf16.msra.mxu0 %v205
    %601 = vmatprep.subr.bf16.mxu0 0
    %602 = vmatpush1.bf16.msra.mxu0 %v204
    %603 = vmatprep.subr.bf16.mxu0 0
    %604 = vmatpush2.bf16.msra.mxu0 0
    %605 = vmatprep.subr.bf16.mxu0 0
    %606 = vmatpush2.bf16.msra.mxu0 0
    %607 = vmatprep.subr.bf16.mxu0 0
    %608 = vmatpush2.bf16.msra.mxu0 0
    %609 = vmatprep.subr.bf16.mxu0 0
    %610 = vmatpush2.bf16.msra.mxu0 0
    %611 = vmatprep.subr.bf16.mxu0 0
    %612 = vmatpush2.bf16.msra.mxu0 0
    %613 = vmatprep.subr.bf16.mxu0 0
    %614 = vmatpush2.bf16.msra.mxu0 0
    %615 = vmatprep.subr.bf16.mxu0 0
    %616 = vmatpush2.bf16.msra.mxu0 0
    %617 = vmatprep.subr.bf16.mxu0 0
    %618 = vmatpush2.bf16.msra.mxu0 0
    %619 = vmatprep.mubr.bf16.mxu0 0
    %620 = vmatmul.mubr.bf16.gmra.mxu0 %v477
    %v621 = vpop.f32.mrf.mxu0
    %v622 = vadd.f32 0.0, %v621
    %v623 = vpop.f32.mrf.mxu0
    %v624 = vpop.f32.mrf.mxu0
    %v625 = vpop.f32.mrf.mxu0
    %626 = vdwg.mxu0
    %v627 = vadd.f32 %v174, %v622
    %v628 = vtanh.pop %v627
    %v629 = vmul.f32 %v628, 0.5
    %v630 = vadd.f32 %v629, 0.5
    %v631 = vmul.f32 %v630, %v465
    %633 = vrot.lane.b32.xlu0 %v628, 32
    %v634 = vpop.permute.xlu0 %633
    %v636 = vmul.f32 %v630, %v634
    %638 = vrot.lane.b32.xlu0 %v636, 32
    %v639 = vpop.permute.xlu0 %638
    %v641 = vadd.f32 %v631, %v639
    %v642 = vtanh.pop %v641
    %644 = vrot.lane.b32.xlu0 %v642, 32
    %v645 = vpop.permute.xlu0 %644
    %v647 = vmul.f32 %v630, %v645
    %v648 = vpack.c.bf16 %v647, %v647
    %650 = vrot.lane.b32.xlu0 %v648, 64
    %v651 = vpop.permute.xlu0 %650
    %v653 = vsel %vm208, %v651, 0
    %655 = vmatprep.subr.bf16.mxu0 0
    %656 = vmatpush1.bf16.msra.mxu0 0
    %657 = vmatprep.subr.bf16.mxu0 0
    %658 = vmatpush1.bf16.msra.mxu0 0
    %659 = vmatprep.subr.bf16.mxu0 0
    %660 = vmatpush1.bf16.msra.mxu0 0
    %661 = vmatprep.subr.bf16.mxu0 0
    %662 = vmatpush1.bf16.msra.mxu0 0
    %663 = vmatprep.subr.bf16.mxu0 0
    %664 = vmatpush1.bf16.msra.mxu0 0
    %665 = vmatprep.subr.bf16.mxu0 0
    %666 = vmatpush1.bf16.msra.mxu0 0
    %667 = vmatprep.subr.bf16.mxu0 0
    %668 = vmatpush1.bf16.msra.mxu0 %v292
    %669 = vmatprep.subr.bf16.mxu0 0
    %670 = vmatpush1.bf16.msra.mxu0 %v291
    %671 = vmatprep.subr.bf16.mxu0 0
    %672 = vmatpush2.bf16.msra.mxu0 0
    %673 = vmatprep.subr.bf16.mxu0 0
    %674 = vmatpush2.bf16.msra.mxu0 0
    %675 = vmatprep.subr.bf16.mxu0 0
    %676 = vmatpush2.bf16.msra.mxu0 0
    %677 = vmatprep.subr.bf16.mxu0 0
    %678 = vmatpush2.bf16.msra.mxu0 0
    %679 = vmatprep.subr.bf16.mxu0 0
    %680 = vmatpush2.bf16.msra.mxu0 0
    %681 = vmatprep.subr.bf16.mxu0 0
    %682 = vmatpush2.bf16.msra.mxu0 0
    %683 = vmatprep.subr.bf16.mxu0 0
    %684 = vmatpush2.bf16.msra.mxu0 0
    %685 = vmatprep.subr.bf16.mxu0 0
    %686 = vmatpush2.bf16.msra.mxu0 0
    %687 = vmatprep.mubr.bf16.mxu0 0
    %688 = vmatmul.mubr.bf16.gmra.mxu0 %v653
    %v689 = vpop.f32.mrf.mxu0
    %v690 = vadd.f32 %v278, %v689
    %v691 = vpop.f32.mrf.mxu0
    %v692 = vpop.f32.mrf.mxu0
    %v693 = vpop.f32.mrf.mxu0
    %694 = vdwg.mxu0
    %v695 = vpack.c.bf16 %v586, %v586
    %697 = vrot.lane.b32.xlu0 %v695, 64
    %v698 = vpop.permute.xlu0 %697
    %v700 = vsel %vm208, %v698, 0
    %702 = vmatprep.subr.bf16.mxu0 0
    %703 = vmatpush1.bf16.msra.mxu0 0
    %704 = vmatprep.subr.bf16.mxu0 0
    %705 = vmatpush1.bf16.msra.mxu0 0
    %706 = vmatprep.subr.bf16.mxu0 0
    %707 = vmatpush1.bf16.msra.mxu0 0
    %708 = vmatprep.subr.bf16.mxu0 0
    %709 = vmatpush1.bf16.msra.mxu0 0
    %710 = vmatprep.subr.bf16.mxu0 0
    %711 = vmatpush1.bf16.msra.mxu0 0
    %712 = vmatprep.subr.bf16.mxu0 0
    %713 = vmatpush1.bf16.msra.mxu0 0
    %714 = vmatprep.subr.bf16.mxu0 0
    %715 = vmatpush1.bf16.msra.mxu0 %v347
    %716 = vmatprep.subr.bf16.mxu0 0
    %717 = vmatpush1.bf16.msra.mxu0 %v346
    %718 = vmatprep.subr.bf16.mxu0 0
    %719 = vmatpush2.bf16.msra.mxu0 0
    %720 = vmatprep.subr.bf16.mxu0 0
    %721 = vmatpush2.bf16.msra.mxu0 0
    %722 = vmatprep.subr.bf16.mxu0 0
    %723 = vmatpush2.bf16.msra.mxu0 0
    %724 = vmatprep.subr.bf16.mxu0 0
    %725 = vmatpush2.bf16.msra.mxu0 0
    %726 = vmatprep.subr.bf16.mxu0 0
    %727 = vmatpush2.bf16.msra.mxu0 0
    %728 = vmatprep.subr.bf16.mxu0 0
    %729 = vmatpush2.bf16.msra.mxu0 0
    %730 = vmatprep.subr.bf16.mxu0 0
    %731 = vmatpush2.bf16.msra.mxu0 0
    %732 = vmatprep.subr.bf16.mxu0 0
    %733 = vmatpush2.bf16.msra.mxu0 0
    %734 = vmatprep.mubr.bf16.mxu0 0
    %735 = vmatmul.mubr.bf16.gmra.mxu0 %v700
    %v736 = vpop.f32.mrf.mxu0
    %v737 = vadd.f32 0.0, %v736
    %v738 = vpop.f32.mrf.mxu0
    %v739 = vpop.f32.mrf.mxu0
    %v740 = vpop.f32.mrf.mxu0
    %741 = vdwg.mxu0
    %v742 = vadd.f32 %v690, %v737
    %v743 = vtanh.pop %v742
    %v744 = vmul.f32 %v743, 0.5
    %v745 = vadd.f32 %v744, 0.5
    %v746 = vmul.f32 %v745, %v580
    %748 = vrot.lane.b32.xlu0 %v743, 32
    %v749 = vpop.permute.xlu0 %748
    %v751 = vmul.f32 %v745, %v749
    %753 = vrot.lane.b32.xlu0 %v751, 32
    %v754 = vpop.permute.xlu0 %753
    %v756 = vadd.f32 %v746, %v754
    %v757 = vtanh.pop %v756
    %759 = vrot.lane.b32.xlu0 %v757, 32
    %v760 = vpop.permute.xlu0 %759
    %v762 = vmul.f32 %v745, %v760
    %763 = vmatprep.subr.bf16.mxu0 0
    %764 = vmatpush1.bf16.msra.mxu0 0
    %765 = vmatprep.subr.bf16.mxu0 0
    %766 = vmatpush1.bf16.msra.mxu0 0
    %767 = vmatprep.subr.bf16.mxu0 0
    %768 = vmatpush1.bf16.msra.mxu0 0
    %769 = vmatprep.subr.bf16.mxu0 0
    %770 = vmatpush1.bf16.msra.mxu0 0
    %771 = vmatprep.subr.bf16.mxu0 0
    %772 = vmatpush1.bf16.msra.mxu0 0
    %773 = vmatprep.subr.bf16.mxu0 0
    %774 = vmatpush1.bf16.msra.mxu0 0
    %775 = vmatprep.subr.bf16.mxu0 0
    %776 = vmatpush1.bf16.msra.mxu0 %v205
    %777 = vmatprep.subr.bf16.mxu0 0
    %778 = vmatpush1.bf16.msra.mxu0 %v204
    %779 = vmatprep.subr.bf16.mxu0 0
    %780 = vmatpush2.bf16.msra.mxu0 0
    %781 = vmatprep.subr.bf16.mxu0 0
    %782 = vmatpush2.bf16.msra.mxu0 0
    %783 = vmatprep.subr.bf16.mxu0 0
    %784 = vmatpush2.bf16.msra.mxu0 0
    %785 = vmatprep.subr.bf16.mxu0 0
    %786 = vmatpush2.bf16.msra.mxu0 0
    %787 = vmatprep.subr.bf16.mxu0 0
    %788 = vmatpush2.bf16.msra.mxu0 0
    %789 = vmatprep.subr.bf16.mxu0 0
    %790 = vmatpush2.bf16.msra.mxu0 0
    %791 = vmatprep.subr.bf16.mxu0 0
    %792 = vmatpush2.bf16.msra.mxu0 0
    %793 = vmatprep.subr.bf16.mxu0 0
    %794 = vmatpush2.bf16.msra.mxu0 0
    %795 = vmatprep.mubr.bf16.mxu0 0
    %796 = vmatmul.mubr.bf16.gmra.mxu0 %v653
    %v797 = vpop.f32.mrf.mxu0
    %v798 = vadd.f32 0.0, %v797
    %v799 = vpop.f32.mrf.mxu0
    %v800 = vpop.f32.mrf.mxu0
    %v801 = vpop.f32.mrf.mxu0
    %802 = vdwg.mxu0
    %v803 = vadd.f32 %v177, %v798
    %v804 = vtanh.pop %v803
    %v805 = vmul.f32 %v804, 0.5
    %v806 = vadd.f32 %v805, 0.5
    %v807 = vmul.f32 %v806, %v641
    %809 = vrot.lane.b32.xlu0 %v804, 32
    %v810 = vpop.permute.xlu0 %809
    %v812 = vmul.f32 %v806, %v810
    %814 = vrot.lane.b32.xlu0 %v812, 32
    %v815 = vpop.permute.xlu0 %814
    %v817 = vadd.f32 %v807, %v815
    %v818 = vtanh.pop %v817
    %820 = vrot.lane.b32.xlu0 %v818, 32
    %v821 = vpop.permute.xlu0 %820
    %v823 = vmul.f32 %v806, %v821
    %v824 = vpack.c.bf16 %v823, %v823
    %826 = vrot.lane.b32.xlu0 %v824, 64
    %v827 = vpop.permute.xlu0 %826
    %v829 = vsel %vm208, %v827, 0
    %831 = vmatprep.subr.bf16.mxu0 0
    %832 = vmatpush1.bf16.msra.mxu0 0
    %833 = vmatprep.subr.bf16.mxu0 0
    %834 = vmatpush1.bf16.msra.mxu0 0
    %835 = vmatprep.subr.bf16.mxu0 0
    %836 = vmatpush1.bf16.msra.mxu0 0
    %837 = vmatprep.subr.bf16.mxu0 0
    %838 = vmatpush1.bf16.msra.mxu0 0
    %839 = vmatprep.subr.bf16.mxu0 0
    %840 = vmatpush1.bf16.msra.mxu0 0
    %841 = vmatprep.subr.bf16.mxu0 0
    %842 = vmatpush1.bf16.msra.mxu0 0
    %843 = vmatprep.subr.bf16.mxu0 0
    %844 = vmatpush1.bf16.msra.mxu0 %v292
    %845 = vmatprep.subr.bf16.mxu0 0
    %846 = vmatpush1.bf16.msra.mxu0 %v291
    %847 = vmatprep.subr.bf16.mxu0 0
    %848 = vmatpush2.bf16.msra.mxu0 0
    %849 = vmatprep.subr.bf16.mxu0 0
    %850 = vmatpush2.bf16.msra.mxu0 0
    %851 = vmatprep.subr.bf16.mxu0 0
    %852 = vmatpush2.bf16.msra.mxu0 0
    %853 = vmatprep.subr.bf16.mxu0 0
    %854 = vmatpush2.bf16.msra.mxu0 0
    %855 = vmatprep.subr.bf16.mxu0 0
    %856 = vmatpush2.bf16.msra.mxu0 0
    %857 = vmatprep.subr.bf16.mxu0 0
    %858 = vmatpush2.bf16.msra.mxu0 0
    %859 = vmatprep.subr.bf16.mxu0 0
    %860 = vmatpush2.bf16.msra.mxu0 0
    %861 = vmatprep.subr.bf16.mxu0 0
    %862 = vmatpush2.bf16.msra.mxu0 0
    %863 = vmatprep.mubr.bf16.mxu0 0
    %864 = vmatmul.mubr.bf16.gmra.mxu0 %v829
    %v865 = vpop.f32.mrf.mxu0
    %v866 = vadd.f32 %v278, %v865
    %v867 = vpop.f32.mrf.mxu0
    %v868 = vpop.f32.mrf.mxu0
    %v869 = vpop.f32.mrf.mxu0
    %870 = vdwg.mxu0
    %v871 = vpack.c.bf16 %v762, %v762
    %873 = vrot.lane.b32.xlu0 %v871, 64
    %v874 = vpop.permute.xlu0 %873
    %v876 = vsel %vm208, %v874, 0
    %878 = vmatprep.subr.bf16.mxu0 0
    %879 = vmatpush1.bf16.msra.mxu0 0
    %880 = vmatprep.subr.bf16.mxu0 0
    %881 = vmatpush1.bf16.msra.mxu0 0
    %882 = vmatprep.subr.bf16.mxu0 0
    %883 = vmatpush1.bf16.msra.mxu0 0
    %884 = vmatprep.subr.bf16.mxu0 0
    %885 = vmatpush1.bf16.msra.mxu0 0
    %886 = vmatprep.subr.bf16.mxu0 0
    %887 = vmatpush1.bf16.msra.mxu0 0
    %888 = vmatprep.subr.bf16.mxu0 0
    %889 = vmatpush1.bf16.msra.mxu0 0
    %890 = vmatprep.subr.bf16.mxu0 0
    %891 = vmatpush1.bf16.msra.mxu0 %v347
    %892 = vmatprep.subr.bf16.mxu0 0
    %893 = vmatpush1.bf16.msra.mxu0 %v346
    %894 = vmatprep.subr.bf16.mxu0 0
    %895 = vmatpush2.bf16.msra.mxu0 0
    %896 = vmatprep.subr.bf16.mxu0 0
    %897 = vmatpush2.bf16.msra.mxu0 0
    %898 = vmatprep.subr.bf16.mxu0 0
    %899 = vmatpush2.bf16.msra.mxu0 0
    %900 = vmatprep.subr.bf16.mxu0 0
    %901 = vmatpush2.bf16.msra.mxu0 0
    %902 = vmatprep.subr.bf16.mxu0 0
    %903 = vmatpush2.bf16.msra.mxu0 0
    %904 = vmatprep.subr.bf16.mxu0 0
    %905 = vmatpush2.bf16.msra.mxu0 0
    %906 = vmatprep.subr.bf16.mxu0 0
    %907 = vmatpush2.bf16.msra.mxu0 0
    %908 = vmatprep.subr.bf16.mxu0 0
    %909 = vmatpush2.bf16.msra.mxu0 0
    %910 = vmatprep.mubr.bf16.mxu0 0
    %911 = vmatmul.mubr.bf16.gmra.mxu0 %v876
    %v912 = vpop.f32.mrf.mxu0
    %v913 = vadd.f32 0.0, %v912
    %v914 = vpop.f32.mrf.mxu0
    %v915 = vpop.f32.mrf.mxu0
    %v916 = vpop.f32.mrf.mxu0
    %917 = vdwg.mxu0
    %v918 = vadd.f32 %v866, %v913
    %v919 = vtanh.pop %v918
    %v920 = vmul.f32 %v919, 0.5
    %v921 = vadd.f32 %v920, 0.5
    %v922 = vmul.f32 %v921, %v756
    %924 = vrot.lane.b32.xlu0 %v919, 32
    %v925 = vpop.permute.xlu0 %924
    %v927 = vmul.f32 %v921, %v925
    %929 = vrot.lane.b32.xlu0 %v927, 32
    %v930 = vpop.permute.xlu0 %929
    %v932 = vadd.f32 %v922, %v930
    %v933 = vtanh.pop %v932
    %935 = vrot.lane.b32.xlu0 %v933, 32
    %v936 = vpop.permute.xlu0 %935
    %v938 = vmul.f32 %v921, %v936
    %939 = vmatprep.subr.bf16.mxu0 0
    %940 = vmatpush1.bf16.msra.mxu0 0
    %941 = vmatprep.subr.bf16.mxu0 0
    %942 = vmatpush1.bf16.msra.mxu0 0
    %943 = vmatprep.subr.bf16.mxu0 0
    %944 = vmatpush1.bf16.msra.mxu0 0
    %945 = vmatprep.subr.bf16.mxu0 0
    %946 = vmatpush1.bf16.msra.mxu0 0
    %947 = vmatprep.subr.bf16.mxu0 0
    %948 = vmatpush1.bf16.msra.mxu0 0
    %949 = vmatprep.subr.bf16.mxu0 0
    %950 = vmatpush1.bf16.msra.mxu0 0
    %951 = vmatprep.subr.bf16.mxu0 0
    %952 = vmatpush1.bf16.msra.mxu0 %v205
    %953 = vmatprep.subr.bf16.mxu0 0
    %954 = vmatpush1.bf16.msra.mxu0 %v204
    %955 = vmatprep.subr.bf16.mxu0 0
    %956 = vmatpush2.bf16.msra.mxu0 0
    %957 = vmatprep.subr.bf16.mxu0 0
    %958 = vmatpush2.bf16.msra.mxu0 0
    %959 = vmatprep.subr.bf16.mxu0 0
    %960 = vmatpush2.bf16.msra.mxu0 0
    %961 = vmatprep.subr.bf16.mxu0 0
    %962 = vmatpush2.bf16.msra.mxu0 0
    %963 = vmatprep.subr.bf16.mxu0 0
    %964 = vmatpush2.bf16.msra.mxu0 0
    %965 = vmatprep.subr.bf16.mxu0 0
    %966 = vmatpush2.bf16.msra.mxu0 0
    %967 = vmatprep.subr.bf16.mxu0 0
    %968 = vmatpush2.bf16.msra.mxu0 0
    %969 = vmatprep.subr.bf16.mxu0 0
    %970 = vmatpush2.bf16.msra.mxu0 0
    %971 = vmatprep.mubr.bf16.mxu0 0
    %972 = vmatmul.mubr.bf16.gmra.mxu0 %v829
    %v973 = vpop.f32.mrf.mxu0
    %v974 = vadd.f32 0.0, %v973
    %v975 = vpop.f32.mrf.mxu0
    %v976 = vpop.f32.mrf.mxu0
    %v977 = vpop.f32.mrf.mxu0
    %978 = vdwg.mxu0
    %v979 = vadd.f32 %v182, %v974
    %v980 = vtanh.pop %v979
    %v981 = vmul.f32 %v980, 0.5
    %v982 = vadd.f32 %v981, 0.5
    %v983 = vmul.f32 %v982, %v817
    %985 = vrot.lane.b32.xlu0 %v980, 32
    %v986 = vpop.permute.xlu0 %985
    %v988 = vmul.f32 %v982, %v986
    %990 = vrot.lane.b32.xlu0 %v988, 32
    %v991 = vpop.permute.xlu0 %990
    %v993 = vadd.f32 %v983, %v991
    %v994 = vtanh.pop %v993
    %996 = vrot.lane.b32.xlu0 %v994, 32
    %v997 = vpop.permute.xlu0 %996
    %v999 = vmul.f32 %v982, %v997
    %v1000 = vpack.c.bf16 %v999, %v999
    %1002 = vrot.lane.b32.xlu0 %v1000, 64
    %v1003 = vpop.permute.xlu0 %1002
    %v1005 = vsel %vm208, %v1003, 0
    %1007 = vmatprep.subr.bf16.mxu0 0
    %1008 = vmatpush1.bf16.msra.mxu0 0
    %1009 = vmatprep.subr.bf16.mxu0 0
    %1010 = vmatpush1.bf16.msra.mxu0 0
    %1011 = vmatprep.subr.bf16.mxu0 0
    %1012 = vmatpush1.bf16.msra.mxu0 0
    %1013 = vmatprep.subr.bf16.mxu0 0
    %1014 = vmatpush1.bf16.msra.mxu0 0
    %1015 = vmatprep.subr.bf16.mxu0 0
    %1016 = vmatpush1.bf16.msra.mxu0 0
    %1017 = vmatprep.subr.bf16.mxu0 0
    %1018 = vmatpush1.bf16.msra.mxu0 0
    %1019 = vmatprep.subr.bf16.mxu0 0
    %1020 = vmatpush1.bf16.msra.mxu0 %v292
    %1021 = vmatprep.subr.bf16.mxu0 0
    %1022 = vmatpush1.bf16.msra.mxu0 %v291
    %1023 = vmatprep.subr.bf16.mxu0 0
    %1024 = vmatpush2.bf16.msra.mxu0 0
    %1025 = vmatprep.subr.bf16.mxu0 0
    %1026 = vmatpush2.bf16.msra.mxu0 0
    %1027 = vmatprep.subr.bf16.mxu0 0
    %1028 = vmatpush2.bf16.msra.mxu0 0
    %1029 = vmatprep.subr.bf16.mxu0 0
    %1030 = vmatpush2.bf16.msra.mxu0 0
    %1031 = vmatprep.subr.bf16.mxu0 0
    %1032 = vmatpush2.bf16.msra.mxu0 0
    %1033 = vmatprep.subr.bf16.mxu0 0
    %1034 = vmatpush2.bf16.msra.mxu0 0
    %1035 = vmatprep.subr.bf16.mxu0 0
    %1036 = vmatpush2.bf16.msra.mxu0 0
    %1037 = vmatprep.subr.bf16.mxu0 0
    %1038 = vmatpush2.bf16.msra.mxu0 0
    %1039 = vmatprep.mubr.bf16.mxu0 0
    %1040 = vmatmul.mubr.bf16.gmra.mxu0 %v1005
    %v1041 = vpop.f32.mrf.mxu0
    %v1042 = vadd.f32 %v278, %v1041
    %v1043 = vpop.f32.mrf.mxu0
    %v1044 = vpop.f32.mrf.mxu0
    %v1045 = vpop.f32.mrf.mxu0
    %1046 = vdwg.mxu0
    %v1047 = vpack.c.bf16 %v938, %v938
    %1049 = vrot.lane.b32.xlu0 %v1047, 64
    %v1050 = vpop.permute.xlu0 %1049
    %v1052 = vsel %vm208, %v1050, 0
    %1054 = vmatprep.subr.bf16.mxu0 0
    %1055 = vmatpush1.bf16.msra.mxu0 0
    %1056 = vmatprep.subr.bf16.mxu0 0
    %1057 = vmatpush1.bf16.msra.mxu0 0
    %1058 = vmatprep.subr.bf16.mxu0 0
    %1059 = vmatpush1.bf16.msra.mxu0 0
    %1060 = vmatprep.subr.bf16.mxu0 0
    %1061 = vmatpush1.bf16.msra.mxu0 0
    %1062 = vmatprep.subr.bf16.mxu0 0
    %1063 = vmatpush1.bf16.msra.mxu0 0
    %1064 = vmatprep.subr.bf16.mxu0 0
    %1065 = vmatpush1.bf16.msra.mxu0 0
    %1066 = vmatprep.subr.bf16.mxu0 0
    %1067 = vmatpush1.bf16.msra.mxu0 %v347
    %1068 = vmatprep.subr.bf16.mxu0 0
    %1069 = vmatpush1.bf16.msra.mxu0 %v346
    %1070 = vmatprep.subr.bf16.mxu0 0
    %1071 = vmatpush2.bf16.msra.mxu0 0
    %1072 = vmatprep.subr.bf16.mxu0 0
    %1073 = vmatpush2.bf16.msra.mxu0 0
    %1074 = vmatprep.subr.bf16.mxu0 0
    %1075 = vmatpush2.bf16.msra.mxu0 0
    %1076 = vmatprep.subr.bf16.mxu0 0
    %1077 = vmatpush2.bf16.msra.mxu0 0
    %1078 = vmatprep.subr.bf16.mxu0 0
    %1079 = vmatpush2.bf16.msra.mxu0 0
    %1080 = vmatprep.subr.bf16.mxu0 0
    %1081 = vmatpush2.bf16.msra.mxu0 0
    %1082 = vmatprep.subr.bf16.mxu0 0
    %1083 = vmatpush2.bf16.msra.mxu0 0
    %1084 = vmatprep.subr.bf16.mxu0 0
    %1085 = vmatpush2.bf16.msra.mxu0 0
    %1086 = vmatprep.mubr.bf16.mxu0 0
    %1087 = vmatmul.mubr.bf16.gmra.mxu0 %v1052
    %v1088 = vpop.f32.mrf.mxu0
    %v1089 = vadd.f32 0.0, %v1088
    %v1090 = vpop.f32.mrf.mxu0
    %v1091 = vpop.f32.mrf.mxu0
    %v1092 = vpop.f32.mrf.mxu0
    %1093 = vdwg.mxu0
    %v1094 = vadd.f32 %v1042, %v1089
    %v1095 = vtanh.pop %v1094
    %v1096 = vmul.f32 %v1095, 0.5
    %v1097 = vadd.f32 %v1096, 0.5
    %v1098 = vmul.f32 %v1097, %v932
    %1100 = vrot.lane.b32.xlu0 %v1095, 32
    %v1101 = vpop.permute.xlu0 %1100
    %v1103 = vmul.f32 %v1097, %v1101
    %1105 = vrot.lane.b32.xlu0 %v1103, 32
    %v1106 = vpop.permute.xlu0 %1105
    %v1108 = vadd.f32 %v1098, %v1106
    %v1109 = vtanh.pop %v1108
    %1111 = vrot.lane.b32.xlu0 %v1109, 32
    %v1112 = vpop.permute.xlu0 %1111
    %v1114 = vmul.f32 %v1097, %v1112
    %1115 = vmatprep.subr.bf16.mxu0 0
    %1116 = vmatpush1.bf16.msra.mxu0 0
    %1117 = vmatprep.subr.bf16.mxu0 0
    %1118 = vmatpush1.bf16.msra.mxu0 0
    %1119 = vmatprep.subr.bf16.mxu0 0
    %1120 = vmatpush1.bf16.msra.mxu0 0
    %1121 = vmatprep.subr.bf16.mxu0 0
    %1122 = vmatpush1.bf16.msra.mxu0 0
    %1123 = vmatprep.subr.bf16.mxu0 0
    %1124 = vmatpush1.bf16.msra.mxu0 0
    %1125 = vmatprep.subr.bf16.mxu0 0
    %1126 = vmatpush1.bf16.msra.mxu0 0
    %1127 = vmatprep.subr.bf16.mxu0 0
    %1128 = vmatpush1.bf16.msra.mxu0 %v205
    %1129 = vmatprep.subr.bf16.mxu0 0
    %1130 = vmatpush1.bf16.msra.mxu0 %v204
    %1131 = vmatprep.subr.bf16.mxu0 0
    %1132 = vmatpush2.bf16.msra.mxu0 0
    %1133 = vmatprep.subr.bf16.mxu0 0
    %1134 = vmatpush2.bf16.msra.mxu0 0
    %1135 = vmatprep.subr.bf16.mxu0 0
    %1136 = vmatpush2.bf16.msra.mxu0 0
    %1137 = vmatprep.subr.bf16.mxu0 0
    %1138 = vmatpush2.bf16.msra.mxu0 0
    %1139 = vmatprep.subr.bf16.mxu0 0
    %1140 = vmatpush2.bf16.msra.mxu0 0
    %1141 = vmatprep.subr.bf16.mxu0 0
    %1142 = vmatpush2.bf16.msra.mxu0 0
    %1143 = vmatprep.subr.bf16.mxu0 0
    %1144 = vmatpush2.bf16.msra.mxu0 0
    %1145 = vmatprep.subr.bf16.mxu0 0
    %1146 = vmatpush2.bf16.msra.mxu0 0
    %1147 = vmatprep.mubr.bf16.mxu0 0
    %1148 = vmatmul.mubr.bf16.gmra.mxu0 %v1005
    %v1149 = vpop.f32.mrf.mxu0
    %v1150 = vadd.f32 0.0, %v1149
    %v1151 = vpop.f32.mrf.mxu0
    %v1152 = vpop.f32.mrf.mxu0
    %v1153 = vpop.f32.mrf.mxu0
    %1154 = vdwg.mxu0
    %v1155 = vadd.f32 %v185, %v1150
    %v1156 = vtanh.pop %v1155
    %v1157 = vmul.f32 %v1156, 0.5
    %v1158 = vadd.f32 %v1157, 0.5
    %v1159 = vmul.f32 %v1158, %v993
    %1161 = vrot.lane.b32.xlu0 %v1156, 32
    %v1162 = vpop.permute.xlu0 %1161
    %v1164 = vmul.f32 %v1158, %v1162
    %1166 = vrot.lane.b32.xlu0 %v1164, 32
    %v1167 = vpop.permute.xlu0 %1166
    %v1169 = vadd.f32 %v1159, %v1167
    %v1170 = vtanh.pop %v1169
    %1172 = vrot.lane.b32.xlu0 %v1170, 32
    %v1173 = vpop.permute.xlu0 %1172
    %v1175 = vmul.f32 %v1158, %v1173
    %v1176 = vpack.c.bf16 %v1175, %v1175
    %1178 = vrot.lane.b32.xlu0 %v1176, 64
    %v1179 = vpop.permute.xlu0 %1178
    %v1181 = vsel %vm208, %v1179, 0
    %1183 = vmatprep.subr.bf16.mxu0 0
    %1184 = vmatpush1.bf16.msra.mxu0 0
    %1185 = vmatprep.subr.bf16.mxu0 0
    %1186 = vmatpush1.bf16.msra.mxu0 0
    %1187 = vmatprep.subr.bf16.mxu0 0
    %1188 = vmatpush1.bf16.msra.mxu0 0
    %1189 = vmatprep.subr.bf16.mxu0 0
    %1190 = vmatpush1.bf16.msra.mxu0 0
    %1191 = vmatprep.subr.bf16.mxu0 0
    %1192 = vmatpush1.bf16.msra.mxu0 0
    %1193 = vmatprep.subr.bf16.mxu0 0
    %1194 = vmatpush1.bf16.msra.mxu0 0
    %1195 = vmatprep.subr.bf16.mxu0 0
    %1196 = vmatpush1.bf16.msra.mxu0 %v292
    %1197 = vmatprep.subr.bf16.mxu0 0
    %1198 = vmatpush1.bf16.msra.mxu0 %v291
    %1199 = vmatprep.subr.bf16.mxu0 0
    %1200 = vmatpush2.bf16.msra.mxu0 0
    %1201 = vmatprep.subr.bf16.mxu0 0
    %1202 = vmatpush2.bf16.msra.mxu0 0
    %1203 = vmatprep.subr.bf16.mxu0 0
    %1204 = vmatpush2.bf16.msra.mxu0 0
    %1205 = vmatprep.subr.bf16.mxu0 0
    %1206 = vmatpush2.bf16.msra.mxu0 0
    %1207 = vmatprep.subr.bf16.mxu0 0
    %1208 = vmatpush2.bf16.msra.mxu0 0
    %1209 = vmatprep.subr.bf16.mxu0 0
    %1210 = vmatpush2.bf16.msra.mxu0 0
    %1211 = vmatprep.subr.bf16.mxu0 0
    %1212 = vmatpush2.bf16.msra.mxu0 0
    %1213 = vmatprep.subr.bf16.mxu0 0
    %1214 = vmatpush2.bf16.msra.mxu0 0
    %1215 = vmatprep.mubr.bf16.mxu0 0
    %1216 = vmatmul.mubr.bf16.gmra.mxu0 %v1181
    %v1217 = vpop.f32.mrf.mxu0
    %v1218 = vadd.f32 %v278, %v1217
    %v1219 = vpop.f32.mrf.mxu0
    %v1220 = vpop.f32.mrf.mxu0
    %v1221 = vpop.f32.mrf.mxu0
    %1222 = vdwg.mxu0
    %v1223 = vpack.c.bf16 %v1114, %v1114
    %1225 = vrot.lane.b32.xlu0 %v1223, 64
    %v1226 = vpop.permute.xlu0 %1225
    %v1228 = vsel %vm208, %v1226, 0
    %1230 = vmatprep.subr.bf16.mxu0 0
    %1231 = vmatpush1.bf16.msra.mxu0 0
    %1232 = vmatprep.subr.bf16.mxu0 0
    %1233 = vmatpush1.bf16.msra.mxu0 0
    %1234 = vmatprep.subr.bf16.mxu0 0
    %1235 = vmatpush1.bf16.msra.mxu0 0
    %1236 = vmatprep.subr.bf16.mxu0 0
    %1237 = vmatpush1.bf16.msra.mxu0 0
    %1238 = vmatprep.subr.bf16.mxu0 0
    %1239 = vmatpush1.bf16.msra.mxu0 0
    %1240 = vmatprep.subr.bf16.mxu0 0
    %1241 = vmatpush1.bf16.msra.mxu0 0
    %1242 = vmatprep.subr.bf16.mxu0 0
    %1243 = vmatpush1.bf16.msra.mxu0 %v347
    %1244 = vmatprep.subr.bf16.mxu0 0
    %1245 = vmatpush1.bf16.msra.mxu0 %v346
    %1246 = vmatprep.subr.bf16.mxu0 0
    %1247 = vmatpush2.bf16.msra.mxu0 0
    %1248 = vmatprep.subr.bf16.mxu0 0
    %1249 = vmatpush2.bf16.msra.mxu0 0
    %1250 = vmatprep.subr.bf16.mxu0 0
    %1251 = vmatpush2.bf16.msra.mxu0 0
    %1252 = vmatprep.subr.bf16.mxu0 0
    %1253 = vmatpush2.bf16.msra.mxu0 0
    %1254 = vmatprep.subr.bf16.mxu0 0
    %1255 = vmatpush2.bf16.msra.mxu0 0
    %1256 = vmatprep.subr.bf16.mxu0 0
    %1257 = vmatpush2.bf16.msra.mxu0 0
    %1258 = vmatprep.subr.bf16.mxu0 0
    %1259 = vmatpush2.bf16.msra.mxu0 0
    %1260 = vmatprep.subr.bf16.mxu0 0
    %1261 = vmatpush2.bf16.msra.mxu0 0
    %1262 = vmatprep.mubr.bf16.mxu0 0
    %1263 = vmatmul.mubr.bf16.gmra.mxu0 %v1228
    %v1264 = vpop.f32.mrf.mxu0
    %v1265 = vadd.f32 0.0, %v1264
    %v1266 = vpop.f32.mrf.mxu0
    %v1267 = vpop.f32.mrf.mxu0
    %v1268 = vpop.f32.mrf.mxu0
    %1269 = vdwg.mxu0
    %v1270 = vadd.f32 %v1218, %v1265
    %v1271 = vtanh.pop %v1270
    %v1272 = vmul.f32 %v1271, 0.5
    %v1273 = vadd.f32 %v1272, 0.5
    %v1274 = vmul.f32 %v1273, %v1108
    %1276 = vrot.lane.b32.xlu0 %v1271, 32
    %v1277 = vpop.permute.xlu0 %1276
    %v1279 = vmul.f32 %v1273, %v1277
    %1281 = vrot.lane.b32.xlu0 %v1279, 32
    %v1282 = vpop.permute.xlu0 %1281
    %v1284 = vadd.f32 %v1274, %v1282
    %v1285 = vtanh.pop %v1284
    %1287 = vrot.lane.b32.xlu0 %v1285, 32
    %v1288 = vpop.permute.xlu0 %1287
    %v1290 = vmul.f32 %v1273, %v1288
    %1291 = vmatprep.subr.bf16.mxu0 0
    %1292 = vmatpush1.bf16.msra.mxu0 0
    %1293 = vmatprep.subr.bf16.mxu0 0
    %1294 = vmatpush1.bf16.msra.mxu0 0
    %1295 = vmatprep.subr.bf16.mxu0 0
    %1296 = vmatpush1.bf16.msra.mxu0 0
    %1297 = vmatprep.subr.bf16.mxu0 0
    %1298 = vmatpush1.bf16.msra.mxu0 0
    %1299 = vmatprep.subr.bf16.mxu0 0
    %1300 = vmatpush1.bf16.msra.mxu0 0
    %1301 = vmatprep.subr.bf16.mxu0 0
    %1302 = vmatpush1.bf16.msra.mxu0 0
    %1303 = vmatprep.subr.bf16.mxu0 0
    %1304 = vmatpush1.bf16.msra.mxu0 %v205
    %1305 = vmatprep.subr.bf16.mxu0 0
    %1306 = vmatpush1.bf16.msra.mxu0 %v204
    %1307 = vmatprep.subr.bf16.mxu0 0
    %1308 = vmatpush2.bf16.msra.mxu0 0
    %1309 = vmatprep.subr.bf16.mxu0 0
    %1310 = vmatpush2.bf16.msra.mxu0 0
    %1311 = vmatprep.subr.bf16.mxu0 0
    %1312 = vmatpush2.bf16.msra.mxu0 0
    %1313 = vmatprep.subr.bf16.mxu0 0
    %1314 = vmatpush2.bf16.msra.mxu0 0
    %1315 = vmatprep.subr.bf16.mxu0 0
    %1316 = vmatpush2.bf16.msra.mxu0 0
    %1317 = vmatprep.subr.bf16.mxu0 0
    %1318 = vmatpush2.bf16.msra.mxu0 0
    %1319 = vmatprep.subr.bf16.mxu0 0
    %1320 = vmatpush2.bf16.msra.mxu0 0
    %1321 = vmatprep.subr.bf16.mxu0 0
    %1322 = vmatpush2.bf16.msra.mxu0 0
    %1323 = vmatprep.mubr.bf16.mxu0 0
    %1324 = vmatmul.mubr.bf16.gmra.mxu0 %v1181
    %v1325 = vpop.f32.mrf.mxu0
    %v1326 = vadd.f32 0.0, %v1325
    %v1327 = vpop.f32.mrf.mxu0
    %v1328 = vpop.f32.mrf.mxu0
    %v1329 = vpop.f32.mrf.mxu0
    %1330 = vdwg.mxu0
    %v1331 = vadd.f32 %v190, %v1326
    %v1332 = vtanh.pop %v1331
    %v1333 = vmul.f32 %v1332, 0.5
    %v1334 = vadd.f32 %v1333, 0.5
    %v1335 = vmul.f32 %v1334, %v1169
    %1337 = vrot.lane.b32.xlu0 %v1332, 32
    %v1338 = vpop.permute.xlu0 %1337
    %v1340 = vmul.f32 %v1334, %v1338
    %1342 = vrot.lane.b32.xlu0 %v1340, 32
    %v1343 = vpop.permute.xlu0 %1342
    %v1345 = vadd.f32 %v1335, %v1343
    %v1346 = vtanh.pop %v1345
    %1348 = vrot.lane.b32.xlu0 %v1346, 32
    %v1349 = vpop.permute.xlu0 %1348
    %v1351 = vmul.f32 %v1334, %v1349
    %v1352 = vpack.c.bf16 %v1351, %v1351
    %1354 = vrot.lane.b32.xlu0 %v1352, 64
    %v1355 = vpop.permute.xlu0 %1354
    %v1357 = vsel %vm208, %v1355, 0
    %1359 = vmatprep.subr.bf16.mxu0 0
    %1360 = vmatpush1.bf16.msra.mxu0 0
    %1361 = vmatprep.subr.bf16.mxu0 0
    %1362 = vmatpush1.bf16.msra.mxu0 0
    %1363 = vmatprep.subr.bf16.mxu0 0
    %1364 = vmatpush1.bf16.msra.mxu0 0
    %1365 = vmatprep.subr.bf16.mxu0 0
    %1366 = vmatpush1.bf16.msra.mxu0 0
    %1367 = vmatprep.subr.bf16.mxu0 0
    %1368 = vmatpush1.bf16.msra.mxu0 0
    %1369 = vmatprep.subr.bf16.mxu0 0
    %1370 = vmatpush1.bf16.msra.mxu0 0
    %1371 = vmatprep.subr.bf16.mxu0 0
    %1372 = vmatpush1.bf16.msra.mxu0 %v292
    %1373 = vmatprep.subr.bf16.mxu0 0
    %1374 = vmatpush1.bf16.msra.mxu0 %v291
    %1375 = vmatprep.subr.bf16.mxu0 0
    %1376 = vmatpush2.bf16.msra.mxu0 0
    %1377 = vmatprep.subr.bf16.mxu0 0
    %1378 = vmatpush2.bf16.msra.mxu0 0
    %1379 = vmatprep.subr.bf16.mxu0 0
    %1380 = vmatpush2.bf16.msra.mxu0 0
    %1381 = vmatprep.subr.bf16.mxu0 0
    %1382 = vmatpush2.bf16.msra.mxu0 0
    %1383 = vmatprep.subr.bf16.mxu0 0
    %1384 = vmatpush2.bf16.msra.mxu0 0
    %1385 = vmatprep.subr.bf16.mxu0 0
    %1386 = vmatpush2.bf16.msra.mxu0 0
    %1387 = vmatprep.subr.bf16.mxu0 0
    %1388 = vmatpush2.bf16.msra.mxu0 0
    %1389 = vmatprep.subr.bf16.mxu0 0
    %1390 = vmatpush2.bf16.msra.mxu0 0
    %1391 = vmatprep.mubr.bf16.mxu0 0
    %1392 = vmatmul.mubr.bf16.gmra.mxu0 %v1357
    %v1393 = vpop.f32.mrf.mxu0
    %v1394 = vadd.f32 %v278, %v1393
    %v1395 = vpop.f32.mrf.mxu0
    %v1396 = vpop.f32.mrf.mxu0
    %v1397 = vpop.f32.mrf.mxu0
    %1398 = vdwg.mxu0
    %v1399 = vpack.c.bf16 %v1290, %v1290
    %1401 = vrot.lane.b32.xlu0 %v1399, 64
    %v1402 = vpop.permute.xlu0 %1401
    %v1404 = vsel %vm208, %v1402, 0
    %1406 = vmatprep.subr.bf16.mxu0 0
    %1407 = vmatpush1.bf16.msra.mxu0 0
    %1408 = vmatprep.subr.bf16.mxu0 0
    %1409 = vmatpush1.bf16.msra.mxu0 0
    %1410 = vmatprep.subr.bf16.mxu0 0
    %1411 = vmatpush1.bf16.msra.mxu0 0
    %1412 = vmatprep.subr.bf16.mxu0 0
    %1413 = vmatpush1.bf16.msra.mxu0 0
    %1414 = vmatprep.subr.bf16.mxu0 0
    %1415 = vmatpush1.bf16.msra.mxu0 0
    %1416 = vmatprep.subr.bf16.mxu0 0
    %1417 = vmatpush1.bf16.msra.mxu0 0
    %1418 = vmatprep.subr.bf16.mxu0 0
    %1419 = vmatpush1.bf16.msra.mxu0 %v347
    %1420 = vmatprep.subr.bf16.mxu0 0
    %1421 = vmatpush1.bf16.msra.mxu0 %v346
    %1422 = vmatprep.subr.bf16.mxu0 0
    %1423 = vmatpush2.bf16.msra.mxu0 0
    %1424 = vmatprep.subr.bf16.mxu0 0
    %1425 = vmatpush2.bf16.msra.mxu0 0
    %1426 = vmatprep.subr.bf16.mxu0 0
    %1427 = vmatpush2.bf16.msra.mxu0 0
    %1428 = vmatprep.subr.bf16.mxu0 0
    %1429 = vmatpush2.bf16.msra.mxu0 0
    %1430 = vmatprep.subr.bf16.mxu0 0
    %1431 = vmatpush2.bf16.msra.mxu0 0
    %1432 = vmatprep.subr.bf16.mxu0 0
    %1433 = vmatpush2.bf16.msra.mxu0 0
    %1434 = vmatprep.subr.bf16.mxu0 0
    %1435 = vmatpush2.bf16.msra.mxu0 0
    %1436 = vmatprep.subr.bf16.mxu0 0
    %1437 = vmatpush2.bf16.msra.mxu0 0
    %1438 = vmatprep.mubr.bf16.mxu0 0
    %1439 = vmatmul.mubr.bf16.gmra.mxu0 %v1404
    %v1440 = vpop.f32.mrf.mxu0
    %v1441 = vadd.f32 0.0, %v1440
    %v1442 = vpop.f32.mrf.mxu0
    %v1443 = vpop.f32.mrf.mxu0
    %v1444 = vpop.f32.mrf.mxu0
    %1445 = vdwg.mxu0
    %v1446 = vadd.f32 %v1394, %v1441
    %v1447 = vtanh.pop %v1446
    %v1448 = vmul.f32 %v1447, 0.5
    %v1449 = vadd.f32 %v1448, 0.5
    %v1450 = vmul.f32 %v1449, %v1284
    %1452 = vrot.lane.b32.xlu0 %v1447, 32
    %v1453 = vpop.permute.xlu0 %1452
    %v1455 = vmul.f32 %v1449, %v1453
    %1457 = vrot.lane.b32.xlu0 %v1455, 32
    %v1458 = vpop.permute.xlu0 %1457
    %v1460 = vadd.f32 %v1450, %v1458
    %v1461 = vtanh.pop %v1460
    %1463 = vrot.lane.b32.xlu0 %v1461, 32
    %v1464 = vpop.permute.xlu0 %1463
    %v1466 = vmul.f32 %v1449, %v1464
    %1467 = vmatprep.subr.bf16.mxu0 0
    %1468 = vmatpush1.bf16.msra.mxu0 0
    %1469 = vmatprep.subr.bf16.mxu0 0
    %1470 = vmatpush1.bf16.msra.mxu0 0
    %1471 = vmatprep.subr.bf16.mxu0 0
    %1472 = vmatpush1.bf16.msra.mxu0 0
    %1473 = vmatprep.subr.bf16.mxu0 0
    %1474 = vmatpush1.bf16.msra.mxu0 0
    %1475 = vmatprep.subr.bf16.mxu0 0
    %1476 = vmatpush1.bf16.msra.mxu0 0
    %1477 = vmatprep.subr.bf16.mxu0 0
    %1478 = vmatpush1.bf16.msra.mxu0 0
    %1479 = vmatprep.subr.bf16.mxu0 0
    %1480 = vmatpush1.bf16.msra.mxu0 %v205
    %1481 = vmatprep.subr.bf16.mxu0 0
    %1482 = vmatpush1.bf16.msra.mxu0 %v204
    %1483 = vmatprep.subr.bf16.mxu0 0
    %1484 = vmatpush2.bf16.msra.mxu0 0
    %1485 = vmatprep.subr.bf16.mxu0 0
    %1486 = vmatpush2.bf16.msra.mxu0 0
    %1487 = vmatprep.subr.bf16.mxu0 0
    %1488 = vmatpush2.bf16.msra.mxu0 0
    %1489 = vmatprep.subr.bf16.mxu0 0
    %1490 = vmatpush2.bf16.msra.mxu0 0
    %1491 = vmatprep.subr.bf16.mxu0 0
    %1492 = vmatpush2.bf16.msra.mxu0 0
    %1493 = vmatprep.subr.bf16.mxu0 0
    %1494 = vmatpush2.bf16.msra.mxu0 0
    %1495 = vmatprep.subr.bf16.mxu0 0
    %1496 = vmatpush2.bf16.msra.mxu0 0
    %1497 = vmatprep.subr.bf16.mxu0 0
    %1498 = vmatpush2.bf16.msra.mxu0 0
    %1499 = vmatprep.mubr.bf16.mxu0 0
    %1500 = vmatmul.mubr.bf16.gmra.mxu0 %v1357
    %v1501 = vpop.f32.mrf.mxu0
    %v1502 = vadd.f32 0.0, %v1501
    %v1503 = vpop.f32.mrf.mxu0
    %v1504 = vpop.f32.mrf.mxu0
    %v1505 = vpop.f32.mrf.mxu0
    %1506 = vdwg.mxu0
    %v1507 = vadd.f32 %v193, %v1502
    %v1508 = vtanh.pop %v1507
    %v1509 = vmul.f32 %v1508, 0.5
    %v1510 = vadd.f32 %v1509, 0.5
    %v1511 = vmul.f32 %v1510, %v1345
    %1513 = vrot.lane.b32.xlu0 %v1508, 32
    %v1514 = vpop.permute.xlu0 %1513
    %v1516 = vmul.f32 %v1510, %v1514
    %1518 = vrot.lane.b32.xlu0 %v1516, 32
    %v1519 = vpop.permute.xlu0 %1518
    %v1521 = vadd.f32 %v1511, %v1519
    %v1522 = vtanh.pop %v1521
    %1524 = vrot.lane.b32.xlu0 %v1522, 32
    %v1525 = vpop.permute.xlu0 %1524
    %v1527 = vmul.f32 %v1510, %v1525
    %v1528 = vpack.c.bf16 %v1527, %v1527
    %1530 = vrot.lane.b32.xlu0 %v1528, 64
    %v1531 = vpop.permute.xlu0 %1530
    %v1533 = vsel %vm208, %v1531, 0
    %1535 = vmatprep.subr.bf16.mxu0 0
    %1536 = vmatpush1.bf16.msra.mxu0 0
    %1537 = vmatprep.subr.bf16.mxu0 0
    %1538 = vmatpush1.bf16.msra.mxu0 0
    %1539 = vmatprep.subr.bf16.mxu0 0
    %1540 = vmatpush1.bf16.msra.mxu0 0
    %1541 = vmatprep.subr.bf16.mxu0 0
    %1542 = vmatpush1.bf16.msra.mxu0 0
    %1543 = vmatprep.subr.bf16.mxu0 0
    %1544 = vmatpush1.bf16.msra.mxu0 0
    %1545 = vmatprep.subr.bf16.mxu0 0
    %1546 = vmatpush1.bf16.msra.mxu0 0
    %1547 = vmatprep.subr.bf16.mxu0 0
    %1548 = vmatpush1.bf16.msra.mxu0 %v292
    %1549 = vmatprep.subr.bf16.mxu0 0
    %1550 = vmatpush1.bf16.msra.mxu0 %v291
    %1551 = vmatprep.subr.bf16.mxu0 0
    %1552 = vmatpush2.bf16.msra.mxu0 0
    %1553 = vmatprep.subr.bf16.mxu0 0
    %1554 = vmatpush2.bf16.msra.mxu0 0
    %1555 = vmatprep.subr.bf16.mxu0 0
    %1556 = vmatpush2.bf16.msra.mxu0 0
    %1557 = vmatprep.subr.bf16.mxu0 0
    %1558 = vmatpush2.bf16.msra.mxu0 0
    %1559 = vmatprep.subr.bf16.mxu0 0
    %1560 = vmatpush2.bf16.msra.mxu0 0
    %1561 = vmatprep.subr.bf16.mxu0 0
    %1562 = vmatpush2.bf16.msra.mxu0 0
    %1563 = vmatprep.subr.bf16.mxu0 0
    %1564 = vmatpush2.bf16.msra.mxu0 0
    %1565 = vmatprep.subr.bf16.mxu0 0
    %1566 = vmatpush2.bf16.msra.mxu0 0
    %1567 = vmatprep.mubr.bf16.mxu0 0
    %1568 = vmatmul.mubr.bf16.gmra.mxu0 %v1533
    %v1569 = vpop.f32.mrf.mxu0
    %v1570 = vadd.f32 %v278, %v1569
    %v1571 = vpop.f32.mrf.mxu0
    %v1572 = vpop.f32.mrf.mxu0
    %v1573 = vpop.f32.mrf.mxu0
    %1574 = vdwg.mxu0
    %v1575 = vpack.c.bf16 %v1466, %v1466
    %1577 = vrot.lane.b32.xlu0 %v1575, 64
    %v1578 = vpop.permute.xlu0 %1577
    %v1580 = vsel %vm208, %v1578, 0
    %1582 = vmatprep.subr.bf16.mxu0 0
    %1583 = vmatpush1.bf16.msra.mxu0 0
    %1584 = vmatprep.subr.bf16.mxu0 0
    %1585 = vmatpush1.bf16.msra.mxu0 0
    %1586 = vmatprep.subr.bf16.mxu0 0
    %1587 = vmatpush1.bf16.msra.mxu0 0
    %1588 = vmatprep.subr.bf16.mxu0 0
    %1589 = vmatpush1.bf16.msra.mxu0 0
    %1590 = vmatprep.subr.bf16.mxu0 0
    %1591 = vmatpush1.bf16.msra.mxu0 0
    %1592 = vmatprep.subr.bf16.mxu0 0
    %1593 = vmatpush1.bf16.msra.mxu0 0
    %1594 = vmatprep.subr.bf16.mxu0 0
    %1595 = vmatpush1.bf16.msra.mxu0 %v347
    %1596 = vmatprep.subr.bf16.mxu0 0
    %1597 = vmatpush1.bf16.msra.mxu0 %v346
    %1598 = vmatprep.subr.bf16.mxu0 0
    %1599 = vmatpush2.bf16.msra.mxu0 0
    %1600 = vmatprep.subr.bf16.mxu0 0
    %1601 = vmatpush2.bf16.msra.mxu0 0
    %1602 = vmatprep.subr.bf16.mxu0 0
    %1603 = vmatpush2.bf16.msra.mxu0 0
    %1604 = vmatprep.subr.bf16.mxu0 0
    %1605 = vmatpush2.bf16.msra.mxu0 0
    %1606 = vmatprep.subr.bf16.mxu0 0
    %1607 = vmatpush2.bf16.msra.mxu0 0
    %1608 = vmatprep.subr.bf16.mxu0 0
    %1609 = vmatpush2.bf16.msra.mxu0 0
    %1610 = vmatprep.subr.bf16.mxu0 0
    %1611 = vmatpush2.bf16.msra.mxu0 0
    %1612 = vmatprep.subr.bf16.mxu0 0
    %1613 = vmatpush2.bf16.msra.mxu0 0
    %1614 = vmatprep.mubr.bf16.mxu0 0
    %1615 = vmatmul.mubr.bf16.gmra.mxu0 %v1580
    %v1616 = vpop.f32.mrf.mxu0
    %v1617 = vadd.f32 0.0, %v1616
    %v1618 = vpop.f32.mrf.mxu0
    %v1619 = vpop.f32.mrf.mxu0
    %v1620 = vpop.f32.mrf.mxu0
    %1621 = vdwg.mxu0
    %v1622 = vadd.f32 %v1570, %v1617
    %v1623 = vtanh.pop %v1622
    %v1624 = vmul.f32 %v1623, 0.5
    %v1625 = vadd.f32 %v1624, 0.5
    %v1626 = vmul.f32 %v1625, %v1460
    %1628 = vrot.lane.b32.xlu0 %v1623, 32
    %v1629 = vpop.permute.xlu0 %1628
    %v1631 = vmul.f32 %v1625, %v1629
    %1633 = vrot.lane.b32.xlu0 %v1631, 32
    %v1634 = vpop.permute.xlu0 %1633
    %v1636 = vadd.f32 %v1626, %v1634
    %v1637 = vtanh.pop %v1636
    %1639 = vrot.lane.b32.xlu0 %v1637, 32
    %v1640 = vpop.permute.xlu0 %1639
    %v1642 = vmul.f32 %v1625, %v1640
    %v1643 = vpack.c.bf16 %v1642, %v1642
    %v1644 = vld [vmem:[#allocation5] sm:$0xf]
    %v1645 = vld [vmem:[#allocation5 + $0x4] sm:$0xf]
    %v1646 = vld [vmem:[#allocation5 + $0x8] sm:$0xf]
    %v1647 = vld [vmem:[#allocation5 + $0xc] sm:$0xf]
    %v1648 = vld [vmem:[%s8] sm:$0x1]
    %v1650 = vlaneseq
    %v1651 = vshrl.u32 %v1650, 7
    %v1652 = vsub.s32 0, %v1651
    %v1653 = vrot.slane %v1648, %v1652
    %1656 = vrot.lane.b32.xlu0 %v1643, 64
    %v1657 = vpop.permute.xlu0 %1656
    %v1662 = vunpack.c.l.b16 %v1644
    %v1663 = vunpack.c.l.b16 %v1645
    %v1664 = vunpack.c.l.b16 %v1646
    %v1665 = vunpack.c.l.b16 %v1647
    %v1666 = vpack.c.b16 %v1663, %v1662
    %v1667 = vpack.c.b16 %v1665, %v1664
    %v1671 = vsel %vm208, %v1657, 0
    %1673 = vmatprep.subr.bf16.mxu0 0
    %1674 = vmatpush1.bf16.msra.mxu0 0
    %1675 = vmatprep.subr.bf16.mxu0 0
    %1676 = vmatpush1.bf16.msra.mxu0 0
    %1677 = vmatprep.subr.bf16.mxu0 0
    %1678 = vmatpush1.bf16.msra.mxu0 0
    %1679 = vmatprep.subr.bf16.mxu0 0
    %1680 = vmatpush1.bf16.msra.mxu0 0
    %1681 = vmatprep.subr.bf16.mxu0 0
    %1682 = vmatpush1.bf16.msra.mxu0 0
    %1683 = vmatprep.subr.bf16.mxu0 0
    %1684 = vmatpush1.bf16.msra.mxu0 0
    %1685 = vmatprep.subr.bf16.mxu0 0
    %1686 = vmatpush1.bf16.msra.mxu0 %v1667
    %1687 = vmatprep.subr.bf16.mxu0 0
    %1688 = vmatpush1.bf16.msra.mxu0 %v1666
    %1689 = vmatprep.subr.bf16.mxu0 0
    %1690 = vmatpush2.bf16.msra.mxu0 0
    %1691 = vmatprep.subr.bf16.mxu0 0
    %1692 = vmatpush2.bf16.msra.mxu0 0
    %1693 = vmatprep.subr.bf16.mxu0 0
    %1694 = vmatpush2.bf16.msra.mxu0 0
    %1695 = vmatprep.subr.bf16.mxu0 0
    %1696 = vmatpush2.bf16.msra.mxu0 0
    %1697 = vmatprep.subr.bf16.mxu0 0
    %1698 = vmatpush2.bf16.msra.mxu0 0
    %1699 = vmatprep.subr.bf16.mxu0 0
    %1700 = vmatpush2.bf16.msra.mxu0 0
    %1701 = vmatprep.subr.bf16.mxu0 0
    %1702 = vmatpush2.bf16.msra.mxu0 0
    %1703 = vmatprep.subr.bf16.mxu0 0
    %1704 = vmatpush2.bf16.msra.mxu0 0
    %1705 = vmatprep.mubr.bf16.mxu0 0
    %1706 = vmatmul.mubr.bf16.gmra.mxu0 %v1671
    %v1707 = vpop.f32.mrf.mxu0
    %v1708 = vadd.f32 %v1653, %v1707
    %v1709 = vpop.f32.mrf.mxu0
    %v1710 = vpop.f32.mrf.mxu0
    %v1711 = vpop.f32.mrf.mxu0
    %1712 = vdwg.mxu0
    %1713 = vst [vmem:[#allocation7] sm:$0xff] %v1708
    // Predicated region
    $region46: #{tpu_custom_call.1} parent=1 // pred_check
      _
    $region47: #{tpu_custom_call.1} parent=1 // pred_check_branch
      %1715 = sbr.rel (0) target = $region49
    $region48: #{tpu_custom_call.1} parent=1 // pred_region
      %s1717 = ssub.s32 128, 128
      %1718 = vsyncadd [#allocation4], %s1717
      %s1720 = sshll.u32 [#allocation7], 4
      %s1721 = int_to_ptr.vmem [resolvable:$true] %s1720
      %1723 = dma.vmem_to_hbm [thread:$0]  %s1721, 128, %s9, [#allocation4]
    $region49: #{tpu_custom_call.1} parent=1 // pred_fallthru
      _
    // Predicated region
    $region50: #{tpu_custom_call.1} parent=1 // pred_check
      _
    $region51: #{tpu_custom_call.1} parent=1 // pred_check_branch
      %1725 = sbr.rel (0) target = $region53
    $region52: #{tpu_custom_call.1} parent=1 // pred_region
      %1726 = dma.done [#allocation4], 128
    $region53: #{tpu_custom_call.1} parent=1 // pred_fallthru
      _
    %1727 = vsyncpa [#allocation3], 1
    %1728 = vsyncpa [#allocation6], 1
    %1729 = vsyncpa [#allocation4], 1

</llo_original>
